<compile_context>
chip_gen: v5e
topology: v5e:2x2
jax: 0.10.0
libtpu: 0.0.40
codegen_flags: <defaults>
</compile_context>

<pallas_src>
import functools
import numpy as np
import jax
import jax.numpy as jnp
from jax.experimental import pallas as pl
from jax.experimental.pallas import tpu as pltpu

# ---------------- model configuration ----------------
MAX_NUM_CPU = 16
MAX_NUM_VNF = 32
DIM_KV_CPU = 8
DIM_KV_VNF = 3
DIM_Q = 3

H_CPU, DH_CPU, DO_CPU, FCN_CPU = 2, 16, 8, 32
H_VNF, DH_VNF, DO_VNF, FCN_VNF = 2, 16, 8, 32

OUT_DIM = FCN_VNF + FCN_CPU + DIM_Q   # 67
OUT_PAD = 128                         # lane-dense output width

# sensor serialization layout: kv_vnf, kv_cpu, mask_vnf, mask_cpu, q_vnf
_SIZES = [MAX_NUM_VNF * DIM_KV_VNF,   # 96
          MAX_NUM_CPU * DIM_KV_CPU,   # 128
          MAX_NUM_VNF,                # 32
          MAX_NUM_CPU,                # 16
          DIM_Q]                      # 3
_OFF = [int(x) for x in np.concatenate([[0], np.cumsum(_SIZES)])]
OBS_DIM = _OFF[-1]                    # 275

# fused operand layout
K_SLAB = 256                          # aligned obs slab (kv_vnf | kv_cpu | mask_vnf junk)
K_REP = 2 * K_SLAB                    # 512: one slab copy per attention head
N_SCORE = 2 * (MAX_NUM_VNF + MAX_NUM_CPU)   # 96 score columns: [v0 | c0 | v1 | c1]
N_A = K_REP + OUT_PAD                 # 640: query-projection cols + q-passthrough cols

_LANE = {('vnf', 0): 0,
         ('cpu', 0): MAX_NUM_VNF * DIM_KV_VNF,
         ('vnf', 1): K_SLAB,
         ('cpu', 1): K_SLAB + MAX_NUM_VNF * DIM_KV_VNF}
_COL = {('vnf', 0): 0, ('cpu', 0): 32, ('vnf', 1): 48, ('cpu', 1): 80}


# ---------------- Pallas kernel ----------------
def cpu_player_kernel(obs_ref, a_ref, g_ref, seg_ref, r_ref, w_ref, bias_ref, out_ref):
    obs = obs_ref[...]                                        # (TB, 275) f32

    # 128-aligned slab copies (no lane rolls for kv); garbage lanes are zeroed by weights.
    slab = obs[:, 0:K_SLAB]                                   # kv_vnf | kv_cpu | mask_vnf
    kvrep = jnp.concatenate([slab, slab], axis=-1)            # (TB, 512)
    m48 = obs[:, _OFF[2]:_OFF[4]]                             # (TB, 48)  mask_vnf | mask_cpu
    mrep = jnp.concatenate([m48, m48], axis=-1)               # (TB, 96)  matches score cols
    q = obs[:, _OFF[4]:_OFF[5]]                               # (TB, 3)

    # One K=3 MXU push: per-head query projections (cols 0:512) + q passthrough (512:640).
    u_all = jnp.dot(q.astype(jnp.bfloat16), a_ref[...],
                    preferred_element_type=jnp.float32)       # (TB, 640)
    u = u_all[:, 0:K_REP]                                     # (TB, 512)
    q_pass = u_all[:, K_REP:N_A]                              # (TB, 128): q at cols 64:67

    # Masked scores for all heads / both branches in one matmul.
    prod = (kvrep * u).astype(jnp.bfloat16)                   # (TB, 512)
    scores = jnp.dot(prod, g_ref[...], preferred_element_type=jnp.float32)   # (TB, 96)
    scores = scores + (mrep - 1.0) * 1e9                      # -1e9 where mask == 0

    # Segmented softmax (per head / branch).  A single row-wide shift is valid for every
    # segment (softmax is shift invariant); masked lanes underflow to exactly 0.
    gmax = jnp.max(scores, axis=-1, keepdims=True)
    e = jnp.exp(scores - gmax)
    denom = jnp.dot(e.astype(jnp.bfloat16), seg_ref[...],
                    preferred_element_type=jnp.float32)       # per-lane segment sum
    p = e * pl.reciprocal(denom, approx=True)                 # softmax probs (EUP recip)

    # Broadcast p back over kv feature dims, then fuse both branches' value projection,
    # head concat, output linear and q passthrough into ONE (TB,512)@(512,128) matmul.
    p_rep = jnp.dot(p.astype(jnp.bfloat16), r_ref[...],
                    preferred_element_type=jnp.float32)       # (TB, 512)
    f = (kvrep * p_rep).astype(jnp.bfloat16)
    out = jnp.dot(f, w_ref[...], preferred_element_type=jnp.float32)
    out = out + q_pass + bias_ref[...]                        # (TB, 128) f32

    # ELU on the two linear outputs (cols 0:64); q / padding columns pass through.
    col = jax.lax.broadcasted_iota(jnp.int32, out.shape, 1)
    elu = jnp.where(out > 0.0, out, jnp.exp(jnp.minimum(out, 0.0)) - 1.0)
    out_ref[...] = jnp.where(col < FCN_VNF + FCN_CPU, elu, out)   # single full-width store


# ---------------- wrapper ----------------
def _round_up(x, m):
    return (x + m - 1) // m * m


def _const_spec(shape):
    return pl.BlockSpec(shape, lambda i, _n=len(shape): (0,) * _n)


def _choose_tiling(B, block_b):
    tb_cap = max(8, _round_up(block_b, 8))
    n = max(1, -(-B // tb_cap))
    if B > 8 and n < 2:
        n = 2                      # >=2 grid steps so v7x's 2 TensorCores both get rows
    if n > 1 and n % 2 == 1:
        n += 1                     # keep the grid length even for 2-TC chips
    tb = max(8, _round_up(-(-B // n), 8))
    return tb, tb * n


@functools.partial(jax.jit, static_argnames=("block_b",))
def cpu_player_forward(obs, packed, block_b=1024):
    B = obs.shape[0]
    tb, b_pad = _choose_tiling(B, block_b)
    if b_pad != B:
        # zero rows -> all masks zero -> finite (discarded) outputs
        obs = jnp.pad(obs, ((0, b_pad - B), (0, 0)))

    weights = (packed['a'], packed['g'], packed['seg'], packed['r'],
               packed['w'], packed['bias'])

    out = pl.pallas_call(
        cpu_player_kernel,
        out_shape=jax.ShapeDtypeStruct((b_pad, OUT_PAD), jnp.float32),
        grid=(b_pad // tb,),
        in_specs=[pl.BlockSpec((tb, OBS_DIM), lambda i: (i, 0))]
                 + [_const_spec(w.shape) for w in weights],
        out_specs=pl.BlockSpec((tb, OUT_PAD), lambda i: (i, 0)),
        compiler_params=pltpu.CompilerParams(
            dimension_semantics=("parallel",),
            vmem_limit_bytes=32 * 1024 * 1024),
    )(obs, *weights)
    return out[:B, :OUT_DIM]


# ---------------- static parameter packing (done once, outside the kernel) ----------------
def pack_params(p):
    def np32(x):
        return np.asarray(x, np.float32)

    a = np.zeros((DIM_Q, N_A), np.float32)        # query proj + q passthrough
    g = np.zeros((K_REP, N_SCORE), np.float32)    # 0/1: sum over d within each key slot
    w = np.zeros((K_REP, OUT_PAD), np.float32)    # fused value-proj @ output-linear

    def fill(branch, h, S, D, dh, do, wq, wk, wv, lin_w, ocol, fcn):
        lane0, col0 = _LANE[(branch, h)], _COL[(branch, h)]
        A = np32(wq[h]) @ np32(wk[h]).T / np.sqrt(float(dh))      # (DIM_Q, D)
        WvL = np32(wv[h]) @ np32(lin_w)[h * do:(h + 1) * do, :]   # (D, FCN)
        for s in range(S):
            a[:, lane0 + s * D: lane0 + (s + 1) * D] = A
            g[lane0 + s * D: lane0 + (s + 1) * D, col0 + s] = 1.0
            w[lane0 + s * D: lane0 + (s + 1) * D, ocol: ocol + fcn] = WvL

    for h in range(H_VNF):
        fill('vnf', h, MAX_NUM_VNF, DIM_KV_VNF, DH_VNF, DO_VNF,
             p['wq_vnf'], p['wk_vnf'], p['wv_vnf'], p['lin_vnf_w'], 0, FCN_VNF)
    for h in range(H_CPU):
        fill('cpu', h, MAX_NUM_CPU, DIM_KV_CPU, DH_CPU, DO_CPU,
             p['wq_cpu'], p['wk_cpu'], p['wv_cpu'], p['lin_cpu_w'], FCN_VNF, FCN_CPU)

    # q passthrough: identity block mapped to output cols 64:67 (rides the K=3 push)
    for i in range(DIM_Q):
        a[i, K_REP + FCN_VNF + FCN_CPU + i] = 1.0

    # per-segment (per head / branch) all-ones blocks for the softmax denominators
    seg = np.zeros((N_SCORE, N_SCORE), np.float32)
    for (branch, _h), c0 in _COL.items():
        width = MAX_NUM_VNF if branch == 'vnf' else MAX_NUM_CPU
        seg[c0:c0 + width, c0:c0 + width] = 1.0

    # 0/1 repeat matrix: broadcast p[segment-col] back over that slot's kv dims
    r = np.ascontiguousarray(g.T)

    bias = np.zeros((1, OUT_PAD), np.float32)
    bias[0, :FCN_VNF] = np32(p['lin_vnf_b']).reshape(-1)
    bias[0, FCN_VNF:FCN_VNF + FCN_CPU] = np32(p['lin_cpu_b']).reshape(-1)

    bf = jnp.bfloat16
    return dict(a=jnp.asarray(a, bf), g=jnp.asarray(g, bf), seg=jnp.asarray(seg, bf),
                r=jnp.asarray(r, bf), w=jnp.asarray(w, bf),
                bias=jnp.asarray(bias, jnp.float32))


# ---------------- pure-JAX reference (raw weights, for correctness check) ----------------
def deserialize(obs):
    B = obs.shape[0]
    o = _OFF
    kv_vnf = obs[:, o[0]:o[1]].reshape(B, MAX_NUM_VNF, DIM_KV_VNF)
    kv_cpu = obs[:, o[1]:o[2]].reshape(B, MAX_NUM_CPU, DIM_KV_CPU)
    mask_vnf = obs[:, o[2]:o[3]].reshape(B, MAX_NUM_VNF)
    mask_cpu = obs[:, o[3]:o[4]].reshape(B, MAX_NUM_CPU)
    q_vnf = obs[:, o[4]:o[5]].reshape(B, DIM_Q)
    return kv_vnf, kv_cpu, mask_vnf, mask_cpu, q_vnf


def reference_forward(obs, params):
    kv_vnf, kv_cpu, mask_vnf, mask_cpu, q_vnf = deserialize(obs)

    def mha(q, kv, mask, wq, wk, wv, dh, H):
        outs = []
        for h in range(H):
            qh = q @ wq[h]
            kh = jnp.einsum('bsd,dh->bsh', kv, wk[h])
            vh = jnp.einsum('bsd,do->bso', kv, wv[h])
            s = jnp.einsum('bh,bsh->bs', qh, kh) / np.sqrt(float(dh))
            s = s + (mask - 1.0) * 1e9
            p = jax.nn.softmax(s, axis=-1)
            outs.append(jnp.einsum('bs,bso->bo', p, vh))
        return jnp.concatenate(outs, axis=-1)

    elu = lambda x: jnp.where(x > 0, x, jnp.expm1(x))
    a_cpu = mha(q_vnf, kv_cpu, mask_cpu, params['wq_cpu'], params['wk_cpu'],
                params['wv_cpu'], DH_CPU, H_CPU)
    out_cpu = elu(a_cpu @ params['lin_cpu_w'] + params['lin_cpu_b'])
    a_vnf = mha(q_vnf, kv_vnf, mask_vnf, params['wq_vnf'], params['wk_vnf'],
                params['wv_vnf'], DH_VNF, H_VNF)
    out_vnf = elu(a_vnf @ params['lin_vnf_w'] + params['lin_vnf_b'])
    return jnp.concatenate([out_vnf, out_cpu, q_vnf], axis=-1)


# ---------------- deterministic parameter / input construction ----------------
def init_params(key):
    ks = jax.random.split(key, 10)
    s = 0.1
    return {
        'wq_cpu': s * jax.random.normal(ks[0], (H_CPU, DIM_Q, DH_CPU), jnp.float32),
        'wk_cpu': s * jax.random.normal(ks[1], (H_CPU, DIM_KV_CPU, DH_CPU), jnp.float32),
        'wv_cpu': s * jax.random.normal(ks[2], (H_CPU, DIM_KV_CPU, DO_CPU), jnp.float32),
        'wq_vnf': s * jax.random.normal(ks[3], (H_VNF, DIM_Q, DH_VNF), jnp.float32),
        'wk_vnf': s * jax.random.normal(ks[4], (H_VNF, DIM_KV_VNF, DH_VNF), jnp.float32),
        'wv_vnf': s * jax.random.normal(ks[5], (H_VNF, DIM_KV_VNF, DO_VNF), jnp.float32),
        'lin_cpu_w': s * jax.random.normal(ks[6], (H_CPU * DO_CPU, FCN_CPU), jnp.float32),
        'lin_cpu_b': s * jax.random.normal(ks[7], (1, FCN_CPU), jnp.float32),
        'lin_vnf_w': s * jax.random.normal(ks[8], (H_VNF * DO_VNF, FCN_VNF), jnp.float32),
        'lin_vnf_b': s * jax.random.normal(ks[9], (1, FCN_VNF), jnp.float32),
    }


def make_obs(key, batch):
    """Build obs (B, 275) from sensor-like components, then serialize."""
    k = jax.random.split(key, 5)
    kv_vnf = jax.random.normal(k[0], (batch, MAX_NUM_VNF, DIM_KV_VNF), jnp.float32)
    kv_cpu = jax.random.normal(k[1], (batch, MAX_NUM_CPU, DIM_KV_CPU), jnp.float32)
    mask_vnf = jax.random.bernoulli(k[2], 0.6, (batch, MAX_NUM_VNF)).astype(jnp.float32)
    mask_cpu = jax.random.bernoulli(k[3], 0.6, (batch, MAX_NUM_CPU)).astype(jnp.float32)
    # ensure at least one valid key per row (as the real sensor does)
    mask_vnf = mask_vnf.at[:, 0].set(1.0)
    mask_cpu = mask_cpu.at[:, 0].set(1.0)
    q_vnf = jax.random.normal(k[4], (batch, 1, DIM_Q), jnp.float32)
    obs = jnp.concatenate([
        kv_vnf.reshape(batch, -1),
        kv_cpu.reshape(batch, -1),
        mask_vnf.reshape(batch, -1),
        mask_cpu.reshape(batch, -1),
        q_vnf.reshape(batch, -1),
    ], axis=-1)
    assert obs.shape == (batch, OBS_DIM)
    return obs


if __name__ == "__main__":
    key = jax.random.PRNGKey(0)
    k_params, k_obs = jax.random.split(key)
    params = init_params(k_params)
    packed = pack_params(params)

    B = 64
    obs = make_obs(k_obs, batch=B)

    # default block_b=1024 -> tb=32, grid=2 (even, both v7x cores used)
    out = cpu_player_forward(obs, packed)
    out = jax.block_until_ready(out)

    ref = reference_forward(obs, params)
    # Tolerance reflects bf16 MXU-operand quantization (~2^-8 relative) requested by the
    # perf review; softmax / mask / bias / accumulation all remain f32.
    np.testing.assert_allclose(np.asarray(out), np.asarray(ref), rtol=1e-2, atol=1e-2)

    assert out.shape == (B, OUT_DIM)
    print("KERNEL_OK")
</pallas_src>

<mosaic_0001>
module attributes {stable_mosaic.version = 11 : i64} {
  func.func @cpu_player_kernel(%arg0: i32, %arg1: memref<32x275xf32, #tpu.memory_space<vmem>>, %arg2: memref<3x640xbf16, #tpu.memory_space<vmem>>, %arg3: memref<512x96xbf16, #tpu.memory_space<vmem>>, %arg4: memref<96x96xbf16, #tpu.memory_space<vmem>>, %arg5: memref<96x512xbf16, #tpu.memory_space<vmem>>, %arg6: memref<512x128xbf16, #tpu.memory_space<vmem>>, %arg7: memref<1x128xf32, #tpu.memory_space<vmem>>, %arg8: memref<32x128xf32, #tpu.memory_space<vmem>>) attributes {dimension_semantics = [#tpu.dimension_semantics<parallel>], iteration_bounds = array<i64: 2>, scalar_prefetch = 0 : i64, scratch_operands = 0 : i64, tpu.core_type = #tpu.core_type<tc>, window_params = [{transform_indices = @transform_0, window_bounds = array<i64: 32, 275>}, {pipeline_mode = #tpu.pipeline_mode<synchronous>, transform_indices = @transform_1, window_bounds = array<i64: 3, 640>}, {pipeline_mode = #tpu.pipeline_mode<synchronous>, transform_indices = @transform_2, window_bounds = array<i64: 512, 96>}, {pipeline_mode = #tpu.pipeline_mode<synchronous>, transform_indices = @transform_3, window_bounds = array<i64: 96, 96>}, {pipeline_mode = #tpu.pipeline_mode<synchronous>, transform_indices = @transform_4, window_bounds = array<i64: 96, 512>}, {pipeline_mode = #tpu.pipeline_mode<synchronous>, transform_indices = @transform_5, window_bounds = array<i64: 512, 128>}, {pipeline_mode = #tpu.pipeline_mode<synchronous>, transform_indices = @transform_6, window_bounds = array<i64: 1, 128>}, {transform_indices = @transform_7, window_bounds = array<i64: 32, 128>}]} {
    %c0 = arith.constant 0 : index
    %c0_0 = arith.constant 0 : index
    %0 = vector.load %arg1[%c0, %c0_0] : memref<32x275xf32, #tpu.memory_space<vmem>>, vector<32x275xf32>
    %1 = vector.extract_strided_slice %0 {offsets = [0, 0], sizes = [32, 256], strides = [1, 1]} : vector<32x275xf32> to vector<32x256xf32>
    %2 = tpu.concatenate %1, %1 in 1 : vector<32x256xf32>, vector<32x256xf32> -> vector<32x512xf32>
    %3 = vector.extract_strided_slice %0 {offsets = [0, 224], sizes = [32, 48], strides = [1, 1]} : vector<32x275xf32> to vector<32x48xf32>
    %4 = tpu.concatenate %3, %3 in 1 : vector<32x48xf32>, vector<32x48xf32> -> vector<32x96xf32>
    %5 = vector.extract_strided_slice %0 {offsets = [0, 272], sizes = [32, 3], strides = [1, 1]} : vector<32x275xf32> to vector<32x3xf32>
    %6 = arith.truncf %5 : vector<32x3xf32> to vector<32x3xbf16>
    %c0_1 = arith.constant 0 : index
    %c0_2 = arith.constant 0 : index
    %7 = vector.load %arg2[%c0_1, %c0_2] : memref<3x640xbf16, #tpu.memory_space<vmem>>, vector<3x640xbf16>
    %cst = arith.constant dense<0.000000e+00> : vector<32x640xf32>
    %8 = tpu.matmul %6, %7, %cst {dimension_numbers = #tpu.dot_dimension_numbers<[1], [0], [0], [1], [0, 0, 1, 1], [], []>} : vector<32x3xbf16>, vector<3x640xbf16>, vector<32x640xf32> -> vector<32x640xf32>
    %9 = vector.extract_strided_slice %8 {offsets = [0, 0], sizes = [32, 512], strides = [1, 1]} : vector<32x640xf32> to vector<32x512xf32>
    %10 = vector.extract_strided_slice %8 {offsets = [0, 512], sizes = [32, 128], strides = [1, 1]} : vector<32x640xf32> to vector<32x128xf32>
    %11 = arith.mulf %2, %9 : vector<32x512xf32>
    %12 = arith.truncf %11 : vector<32x512xf32> to vector<32x512xbf16>
    %c0_3 = arith.constant 0 : index
    %c0_4 = arith.constant 0 : index
    %13 = vector.load %arg3[%c0_3, %c0_4] : memref<512x96xbf16, #tpu.memory_space<vmem>>, vector<512x96xbf16>
    %cst_5 = arith.constant dense<0.000000e+00> : vector<32x96xf32>
    %14 = tpu.matmul %12, %13, %cst_5 {dimension_numbers = #tpu.dot_dimension_numbers<[1], [0], [0], [1], [0, 0, 1, 1], [], []>} : vector<32x512xbf16>, vector<512x96xbf16>, vector<32x96xf32> -> vector<32x96xf32>
    %cst_6 = arith.constant 1.000000e+00 : f32
    %15 = vector.broadcast %cst_6 : f32 to vector<32x96xf32>
    %16 = arith.subf %4, %15 : vector<32x96xf32>
    %cst_7 = arith.constant 1.000000e+09 : f32
    %17 = vector.broadcast %cst_7 : f32 to vector<32x96xf32>
    %18 = arith.mulf %16, %17 : vector<32x96xf32>
    %19 = arith.addf %14, %18 : vector<32x96xf32>
    %cst_8 = arith.constant dense<0xFF800000> : vector<32xf32>
    %20 = vector.multi_reduction <maximumf>, %19, %cst_8 [1] : vector<32x96xf32> to vector<32xf32>
    %21 = vector.shape_cast %20 : vector<32xf32> to vector<32x1xf32>
    %22 = vector.broadcast %21 : vector<32x1xf32> to vector<32x96xf32>
    %23 = arith.subf %19, %22 : vector<32x96xf32>
    %24 = math.exp %23 : vector<32x96xf32>
    %25 = arith.truncf %24 : vector<32x96xf32> to vector<32x96xbf16>
    %c0_9 = arith.constant 0 : index
    %c0_10 = arith.constant 0 : index
    %26 = vector.load %arg4[%c0_9, %c0_10] : memref<96x96xbf16, #tpu.memory_space<vmem>>, vector<96x96xbf16>
    %cst_11 = arith.constant dense<0.000000e+00> : vector<32x96xf32>
    %27 = tpu.matmul %25, %26, %cst_11 {dimension_numbers = #tpu.dot_dimension_numbers<[1], [0], [0], [1], [0, 0, 1, 1], [], []>} : vector<32x96xbf16>, vector<96x96xbf16>, vector<32x96xf32> -> vector<32x96xf32>
    %28 = tpu.reciprocal %27 {approx = true} : vector<32x96xf32> -> vector<32x96xf32>
    %29 = arith.mulf %24, %28 : vector<32x96xf32>
    %30 = arith.truncf %29 : vector<32x96xf32> to vector<32x96xbf16>
    %c0_12 = arith.constant 0 : index
    %c0_13 = arith.constant 0 : index
    %31 = vector.load %arg5[%c0_12, %c0_13] : memref<96x512xbf16, #tpu.memory_space<vmem>>, vector<96x512xbf16>
    %cst_14 = arith.constant dense<0.000000e+00> : vector<32x512xf32>
    %32 = tpu.matmul %30, %31, %cst_14 {dimension_numbers = #tpu.dot_dimension_numbers<[1], [0], [0], [1], [0, 0, 1, 1], [], []>} : vector<32x96xbf16>, vector<96x512xbf16>, vector<32x512xf32> -> vector<32x512xf32>
    %33 = arith.mulf %2, %32 : vector<32x512xf32>
    %34 = arith.truncf %33 : vector<32x512xf32> to vector<32x512xbf16>
    %c0_15 = arith.constant 0 : index
    %c0_16 = arith.constant 0 : index
    %35 = vector.load %arg6[%c0_15, %c0_16] : memref<512x128xbf16, #tpu.memory_space<vmem>>, vector<512x128xbf16>
    %cst_17 = arith.constant dense<0.000000e+00> : vector<32x128xf32>
    %36 = tpu.matmul %34, %35, %cst_17 {dimension_numbers = #tpu.dot_dimension_numbers<[1], [0], [0], [1], [0, 0, 1, 1], [], []>} : vector<32x512xbf16>, vector<512x128xbf16>, vector<32x128xf32> -> vector<32x128xf32>
    %37 = arith.addf %36, %10 : vector<32x128xf32>
    %c0_18 = arith.constant 0 : index
    %c0_19 = arith.constant 0 : index
    %38 = vector.load %arg7[%c0_18, %c0_19] : memref<1x128xf32, #tpu.memory_space<vmem>>, vector<1x128xf32>
    %39 = vector.broadcast %38 : vector<1x128xf32> to vector<32x128xf32>
    %40 = arith.addf %37, %39 : vector<32x128xf32>
    %41 = tpu.iota {dimensions = array<i32: 1>} : vector<32x128xi32>
    %cst_20 = arith.constant 0.000000e+00 : f32
    %42 = vector.broadcast %cst_20 : f32 to vector<32x128xf32>
    %43 = arith.cmpf ogt, %40, %42 : vector<32x128xf32>
    %cst_21 = arith.constant 0.000000e+00 : f32
    %44 = vector.broadcast %cst_21 : f32 to vector<32x128xf32>
    %45 = arith.minimumf %40, %44 : vector<32x128xf32>
    %46 = math.exp %45 : vector<32x128xf32>
    %cst_22 = arith.constant 1.000000e+00 : f32
    %47 = vector.broadcast %cst_22 : f32 to vector<32x128xf32>
    %48 = arith.subf %46, %47 : vector<32x128xf32>
    %49 = arith.select %43, %40, %48 : vector<32x128xi1>, vector<32x128xf32>
    %c64_i32 = arith.constant 64 : i32
    %50 = vector.broadcast %c64_i32 : i32 to vector<32x128xi32>
    %51 = arith.cmpi slt, %41, %50 : vector<32x128xi32>
    %52 = arith.select %51, %49, %40 : vector<32x128xi1>, vector<32x128xf32>
    %c0_23 = arith.constant 0 : index
    %c0_24 = arith.constant 0 : index
    %53 = vector.load %arg8[%c0_23, %c0_24] : memref<32x128xf32, #tpu.memory_space<vmem>>, vector<32x128xf32>
    tpu.vector_store %arg8[%c0_23, %c0_24], %52 {strides = array<i32>} : memref<32x128xf32, #tpu.memory_space<vmem>>, vector<32x128xf32>,
    return
  }
  func.func @transform_0(%arg0: i32) -> (i32, i32) {
    %c0_i32 = arith.constant 0 : i32
    %c0_i32_0 = arith.constant 0 : i32
    return %arg0, %c0_i32 : i32, i32
  }
  func.func @transform_1(%arg0: i32) -> (i32, i32) {
    %c0_i32 = arith.constant 0 : i32
    %c0_i32_0 = arith.constant 0 : i32
    %c0_i32_1 = arith.constant 0 : i32
    return %c0_i32, %c0_i32_0 : i32, i32
  }
  func.func @transform_2(%arg0: i32) -> (i32, i32) {
    %c0_i32 = arith.constant 0 : i32
    %c0_i32_0 = arith.constant 0 : i32
    %c0_i32_1 = arith.constant 0 : i32
    return %c0_i32, %c0_i32_0 : i32, i32
  }
  func.func @transform_3(%arg0: i32) -> (i32, i32) {
    %c0_i32 = arith.constant 0 : i32
    %c0_i32_0 = arith.constant 0 : i32
    %c0_i32_1 = arith.constant 0 : i32
    return %c0_i32, %c0_i32_0 : i32, i32
  }
  func.func @transform_4(%arg0: i32) -> (i32, i32) {
    %c0_i32 = arith.constant 0 : i32
    %c0_i32_0 = arith.constant 0 : i32
    %c0_i32_1 = arith.constant 0 : i32
    return %c0_i32, %c0_i32_0 : i32, i32
  }
  func.func @transform_5(%arg0: i32) -> (i32, i32) {
    %c0_i32 = arith.constant 0 : i32
    %c0_i32_0 = arith.constant 0 : i32
    %c0_i32_1 = arith.constant 0 : i32
    return %c0_i32, %c0_i32_0 : i32, i32
  }
  func.func @transform_6(%arg0: i32) -> (i32, i32) {
    %c0_i32 = arith.constant 0 : i32
    %c0_i32_0 = arith.constant 0 : i32
    %c0_i32_1 = arith.constant 0 : i32
    return %c0_i32, %c0_i32_0 : i32, i32
  }
  func.func @transform_7(%arg0: i32) -> (i32, i32) {
    %c0_i32 = arith.constant 0 : i32
    %c0_i32_0 = arith.constant 0 : i32
    return %arg0, %c0_i32 : i32, i32
  }
}

</mosaic_0001>

<llo_original>
// kernel: cpu_player_forward.1
$region0: #{cpu_player_forward.1}
  #allocation0 [shape = 'u32[]', space=smem, size = 0x4, offset = 0x4, fixed_abs, tag = 'smem constant byte address 0x4 - core index']
  #allocation1 [shape = 'u32[72,128]{1,0:T(1,128)}', space=vmem, size = 0x9000, scoped, tag = 'internal scratch']
  %s0 = inlined_call_operand.vmem [shape: f32[64,275], index: 0, kind: input, shape index: {}]
  %s1 = inlined_call_operand.hbm [shape: bf16[3,640], index: 1, kind: input, shape index: {}]
  %s2 = inlined_call_operand.vmem [shape: bf16[512,96], index: 2, kind: input, shape index: {}]
  %s3 = inlined_call_operand.hbm [shape: bf16[96,96], index: 3, kind: input, shape index: {}]
  %s4 = inlined_call_operand.hbm [shape: bf16[96,512], index: 4, kind: input, shape index: {}]
  %s5 = inlined_call_operand.vmem [shape: bf16[512,128], index: 5, kind: input, shape index: {}]
  %s6 = inlined_call_operand.vmem [shape: f32[1,128], index: 6, kind: input, shape index: {}]
  %s7 = inlined_call_operand.hbm [shape: f32[64,128], index: 7, kind: output, shape index: {}]
  %s8 = sld [smem:[#allocation0]]
  $region73: #{cpu_player_forward.1} parent=0
    _
  %s10 = ssub.s32 1, %s8
  %s11 = scalar_select 0, %s10, %s8
  $region1: #{cpu_player_forward.1} parent=0
    #allocation2 [shape = 'u8[5120]{0}', space=vmem, size = 0x1400, scoped, tag = 'input window, operand 1, single buffered']
    #allocation3 [shape = 's32[2]{0}', space=sflag, size = 0x8, scoped, tag = 'scoped memory for cpu_player_forward.1']
    #allocation4 [shape = 's32[2]{0}', space=sflag, size = 0x8, scoped, tag = 'scoped memory for cpu_player_forward.1']
    #allocation5 [shape = 'u8[24576]{0}', space=vmem, size = 0x6000, scoped, tag = 'input window, operand 3, single buffered']
    #allocation6 [shape = 's32[1]{0}', space=sflag, size = 0x4, scoped, tag = 'scoped memory for cpu_player_forward.1']
    #allocation7 [shape = 'u8[98304]{0}', space=vmem, size = 0x18000, scoped, tag = 'input window, operand 4, single buffered']
    #allocation8 [shape = 'u8[32768]{0}', space=vmem, size = 0x8000, scoped, tag = 'output window, operand 0']
    %12 = vsyncpa [#allocation3], 0
    %13 = vsyncpa [#allocation6], 0
    %14 = vsyncpa [#allocation4], 0
    %s15 = scalar_lea.sflag [#allocation4], 1
    %16 = vsyncpa %s15, 0
    loop: start=0, step=1, limit=4
    $region2: #{cpu_player_forward.1} parent=1 // loop_pre_header
      _
    $region3: #{cpu_player_forward.1} parent=1 // loop_header
      %s18 = sphi 0, %s22
      %p19 = scmp.ge.s32.totalorder %s18, 4
      %s28 = sphi 0, %s30
      %s31 = sphi 0, %s28
      %s32 = sphi 0, %s31
      %s48 = sphi 0, %s32
      %s52 = sphi 0, %s52
      %s54 = sphi 0, %s52
      %s55 = sphi 0, %s54
      %s69 = sphi 0, %s55
      %s73 = sphi 0, %s73
      %s75 = sphi 0, %s73
      %s76 = sphi 0, %s75
      %s90 = sphi 0, %s76
      %s94 = sphi 0, %s94
      %s96 = sphi 0, %s94
      %s97 = sphi 0, %s96
      %s111 = sphi 0, %s97
      %s115 = sphi 0, %s115
      %s117 = sphi 0, %s115
      %s118 = sphi 0, %s117
      %s132 = sphi 0, %s118
      %s136 = sphi 0, %s136
      %s138 = sphi 0, %s136
      %s139 = sphi 0, %s138
      %s153 = sphi 0, %s139
      %s157 = sphi 0, %s157
      %s159 = sphi 0, %s157
      %s160 = sphi 0, %s159
      %s174 = sphi 0, %s160
      %s180 = sphi 0, %s182
      %s183 = sphi 0, %s180
      %s184 = sphi 0, %s183
      %s200 = sphi 0, %s184
    $region4: #{cpu_player_forward.1} parent=1 // loop_header_branch
      %21 = sbr.rel (%p19) target = $region8
    $region5: #{cpu_player_forward.1} parent=1 // loop_body
      %s23 = ssub.s32 %s18, 1
      %s24 = ssub.s32 %s18, 2
      %s25 = sadd.s32 %s18, 1
      %s26 = ssub.s32 %s18, %s25
      %p27 = scmp.eq.s32.totalorder %s26, 0
      %s29 = sadd.s32 %s28, 1
      %s30 = scalar_select %p27, %s28, %s29
      %p33 = pneg %p27
      %p34 = scmp.eq.s32.totalorder %s18, 1
      %p35 = por %p33, %p34
      %p36 = scmp.ne.s32.totalorder %s28, %s31
      %p37 = scmp.eq.s32.totalorder %s18, 0
      %p38 = por %p36, %p37
      %p39 = scmp.ne.s32.totalorder %s28, %s31
      %p40 = scmp.eq.s32.totalorder %s23, 1
      %p41 = por %p39, %p40
      %p42 = scmp.ne.s32.totalorder %s31, %s32
      %p43 = scmp.eq.s32.totalorder %s23, 0
      %p44 = por %p42, %p43
      %p45 = scmp.ne.s32.totalorder %s31, %s32
      %p46 = scmp.eq.s32.totalorder %s24, 1
      %p47 = por %p45, %p46
      %p49 = scmp.ne.s32.totalorder %s32, %s48
      %p50 = scmp.eq.s32.totalorder %s24, 0
      %p51 = por %p49, %p50
      %s53 = sadd.s32 %s52, 1
      %p56 = scmp.eq.s32.totalorder %s18, 1
      %p57 = scmp.ne.s32.totalorder %s52, %s54
      %p58 = scmp.eq.s32.totalorder %s18, 0
      %p59 = por %p57, %p58
      %p60 = scmp.ne.s32.totalorder %s52, %s54
      %p61 = scmp.eq.s32.totalorder %s23, 1
      %p62 = por %p60, %p61
      %p63 = scmp.ne.s32.totalorder %s54, %s55
      %p64 = scmp.eq.s32.totalorder %s23, 0
      %p65 = por %p63, %p64
      %p66 = scmp.ne.s32.totalorder %s54, %s55
      %p67 = scmp.eq.s32.totalorder %s24, 1
      %p68 = por %p66, %p67
      %p70 = scmp.ne.s32.totalorder %s55, %s69
      %p71 = scmp.eq.s32.totalorder %s24, 0
      %p72 = por %p70, %p71
      %s74 = sadd.s32 %s73, 1
      %p77 = scmp.eq.s32.totalorder %s18, 1
      %p78 = scmp.ne.s32.totalorder %s73, %s75
      %p79 = scmp.eq.s32.totalorder %s18, 0
      %p80 = por %p78, %p79
      %p81 = scmp.ne.s32.totalorder %s73, %s75
      %p82 = scmp.eq.s32.totalorder %s23, 1
      %p83 = por %p81, %p82
      %p84 = scmp.ne.s32.totalorder %s75, %s76
      %p85 = scmp.eq.s32.totalorder %s23, 0
      %p86 = por %p84, %p85
      %p87 = scmp.ne.s32.totalorder %s75, %s76
      %p88 = scmp.eq.s32.totalorder %s24, 1
      %p89 = por %p87, %p88
      %p91 = scmp.ne.s32.totalorder %s76, %s90
      %p92 = scmp.eq.s32.totalorder %s24, 0
      %p93 = por %p91, %p92
      %s95 = sadd.s32 %s94, 1
      %p98 = scmp.eq.s32.totalorder %s18, 1
      %p99 = scmp.ne.s32.totalorder %s94, %s96
      %p100 = scmp.eq.s32.totalorder %s18, 0
      %p101 = por %p99, %p100
      %p102 = scmp.ne.s32.totalorder %s94, %s96
      %p103 = scmp.eq.s32.totalorder %s23, 1
      %p104 = por %p102, %p103
      %p105 = scmp.ne.s32.totalorder %s96, %s97
      %p106 = scmp.eq.s32.totalorder %s23, 0
      %p107 = por %p105, %p106
      %p108 = scmp.ne.s32.totalorder %s96, %s97
      %p109 = scmp.eq.s32.totalorder %s24, 1
      %p110 = por %p108, %p109
      %p112 = scmp.ne.s32.totalorder %s97, %s111
      %p113 = scmp.eq.s32.totalorder %s24, 0
      %p114 = por %p112, %p113
      %s116 = sadd.s32 %s115, 1
      %p119 = scmp.eq.s32.totalorder %s18, 1
      %p120 = scmp.ne.s32.totalorder %s115, %s117
      %p121 = scmp.eq.s32.totalorder %s18, 0
      %p122 = por %p120, %p121
      %p123 = scmp.ne.s32.totalorder %s115, %s117
      %p124 = scmp.eq.s32.totalorder %s23, 1
      %p125 = por %p123, %p124
      %p126 = scmp.ne.s32.totalorder %s117, %s118
      %p127 = scmp.eq.s32.totalorder %s23, 0
      %p128 = por %p126, %p127
      %p129 = scmp.ne.s32.totalorder %s117, %s118
      %p130 = scmp.eq.s32.totalorder %s24, 1
      %p131 = por %p129, %p130
      %p133 = scmp.ne.s32.totalorder %s118, %s132
      %p134 = scmp.eq.s32.totalorder %s24, 0
      %p135 = por %p133, %p134
      %s137 = sadd.s32 %s136, 1
      %p140 = scmp.eq.s32.totalorder %s18, 1
      %p141 = scmp.ne.s32.totalorder %s136, %s138
      %p142 = scmp.eq.s32.totalorder %s18, 0
      %p143 = por %p141, %p142
      %p144 = scmp.ne.s32.totalorder %s136, %s138
      %p145 = scmp.eq.s32.totalorder %s23, 1
      %p146 = por %p144, %p145
      %p147 = scmp.ne.s32.totalorder %s138, %s139
      %p148 = scmp.eq.s32.totalorder %s23, 0
      %p149 = por %p147, %p148
      %p150 = scmp.ne.s32.totalorder %s138, %s139
      %p151 = scmp.eq.s32.totalorder %s24, 1
      %p152 = por %p150, %p151
      %p154 = scmp.ne.s32.totalorder %s139, %s153
      %p155 = scmp.eq.s32.totalorder %s24, 0
      %p156 = por %p154, %p155
      %s158 = sadd.s32 %s157, 1
      %p161 = scmp.eq.s32.totalorder %s18, 1
      %p162 = scmp.ne.s32.totalorder %s157, %s159
      %p163 = scmp.eq.s32.totalorder %s18, 0
      %p164 = por %p162, %p163
      %p165 = scmp.ne.s32.totalorder %s157, %s159
      %p166 = scmp.eq.s32.totalorder %s23, 1
      %p167 = por %p165, %p166
      %p168 = scmp.ne.s32.totalorder %s159, %s160
      %p169 = scmp.eq.s32.totalorder %s23, 0
      %p170 = por %p168, %p169
      %p171 = scmp.ne.s32.totalorder %s159, %s160
      %p172 = scmp.eq.s32.totalorder %s24, 1
      %p173 = por %p171, %p172
      %p175 = scmp.ne.s32.totalorder %s160, %s174
      %p176 = scmp.eq.s32.totalorder %s24, 0
      %p177 = por %p175, %p176
      %s178 = ssub.s32 %s18, %s25
      %p179 = scmp.eq.s32.totalorder %s178, 0
      %s181 = sadd.s32 %s180, 1
      %s182 = scalar_select %p179, %s180, %s181
      %p185 = pneg %p179
      %p186 = scmp.eq.s32.totalorder %s18, 1
      %p187 = por %p185, %p186
      %p188 = scmp.ne.s32.totalorder %s180, %s183
      %p189 = scmp.eq.s32.totalorder %s18, 0
      %p190 = por %p188, %p189
      %p191 = scmp.ne.s32.totalorder %s180, %s183
      %p192 = scmp.eq.s32.totalorder %s23, 1
      %p193 = por %p191, %p192
      %p194 = scmp.ne.s32.totalorder %s183, %s184
      %p195 = scmp.eq.s32.totalorder %s23, 0
      %p196 = por %p194, %p195
      %p197 = scmp.ne.s32.totalorder %s183, %s184
      %p198 = scmp.eq.s32.totalorder %s24, 1
      %p199 = por %p197, %p198
      %p201 = scmp.ne.s32.totalorder %s184, %s200
      %p202 = scmp.eq.s32.totalorder %s24, 0
      %p203 = por %p201, %p202
      %p204 = scmp.le.s32.totalorder 1, %s18
      %p205 = scmp.lt.s32.totalorder %s18, 3
      %p206 = pnand %p204, %p205
      %p207 = pneg %p206
      // Predicated region
      $region9: #{cpu_player_forward.1} parent=5 // pred_check
        _
      $region10: #{cpu_player_forward.1} parent=5 // pred_check_branch
        %209 = sbr.rel (%p206) target = $region12
      $region11: #{cpu_player_forward.1} parent=5 // pred_region
        %s210 = ssub.s32 %s18, 1
        // Predicated region
        $region13: #{cpu_player_forward.1} parent=11 // pred_check
          %p211 = pneg %p65
        $region14: #{cpu_player_forward.1} parent=11 // pred_check_branch
          %213 = sbr.rel (%p211) target = $region16
        $region15: #{cpu_player_forward.1} parent=11 // pred_region
          %215 = vsyncadd [#allocation3], 0
          %s217 = sshll.u32 %s1, 4
          %s218 = int_to_ptr.hbm [resolvable:$true] %s217
          %s219 = sshll.u32 [#allocation2], 4
          %s220 = int_to_ptr.vmem [resolvable:$true] %s219
          %222 = dma.hbm_to_vmem [thread:$0]  %s218, 160, %s220, [#allocation3]
        $region16: #{cpu_player_forward.1} parent=11 // pred_fallthru
          _
        // Predicated region
        $region17: #{cpu_player_forward.1} parent=11 // pred_check
          %p223 = pneg %p86
        $region18: #{cpu_player_forward.1} parent=11 // pred_check_branch
          %225 = sbr.rel (%p223) target = $region20
        $region19: #{cpu_player_forward.1} parent=11 // pred_region
          _
        $region20: #{cpu_player_forward.1} parent=11 // pred_fallthru
          _
        // Predicated region
        $region21: #{cpu_player_forward.1} parent=11 // pred_check
          %p226 = pneg %p107
        $region22: #{cpu_player_forward.1} parent=11 // pred_check_branch
          %228 = sbr.rel (%p226) target = $region24
        $region23: #{cpu_player_forward.1} parent=11 // pred_region
          %230 = vsyncadd [#allocation6], 0
          %s231 = sshll.u32 %s3, 4
          %s232 = int_to_ptr.hbm [resolvable:$true] %s231
          %s233 = sshll.u32 [#allocation5], 4
          %s234 = int_to_ptr.vmem [resolvable:$true] %s233
          %239 = dma.hbm_to_vmem [thread:$0]  %s232, 768, %s234, [#allocation6], 64, 64, 4
        $region24: #{cpu_player_forward.1} parent=11 // pred_fallthru
          _
        // Predicated region
        $region25: #{cpu_player_forward.1} parent=11 // pred_check
          %p240 = pneg %p128
        $region26: #{cpu_player_forward.1} parent=11 // pred_check_branch
          %242 = sbr.rel (%p240) target = $region28
        $region27: #{cpu_player_forward.1} parent=11 // pred_region
          %244 = vsyncadd [#allocation6], 0
          %s245 = sshll.u32 %s4, 4
          %s246 = int_to_ptr.hbm [resolvable:$true] %s245
          %s247 = sshll.u32 [#allocation7], 4
          %s248 = int_to_ptr.vmem [resolvable:$true] %s247
          %253 = dma.hbm_to_vmem [thread:$0]  %s246, 3072, %s248, [#allocation6], 256, 256, 16
        $region28: #{cpu_player_forward.1} parent=11 // pred_fallthru
          _
        // Predicated region
        $region29: #{cpu_player_forward.1} parent=11 // pred_check
          %p254 = pneg %p149
        $region30: #{cpu_player_forward.1} parent=11 // pred_check_branch
          %256 = sbr.rel (%p254) target = $region32
        $region31: #{cpu_player_forward.1} parent=11 // pred_region
          _
        $region32: #{cpu_player_forward.1} parent=11 // pred_fallthru
          _
        // Predicated region
        $region33: #{cpu_player_forward.1} parent=11 // pred_check
          %p257 = pneg %p170
        $region34: #{cpu_player_forward.1} parent=11 // pred_check_branch
          %259 = sbr.rel (%p257) target = $region36
        $region35: #{cpu_player_forward.1} parent=11 // pred_region
          _
        $region36: #{cpu_player_forward.1} parent=11 // pred_fallthru
          _
      $region12: #{cpu_player_forward.1} parent=5 // pred_fallthru
        _
      %p260 = scmp.lt.s32.totalorder %s18, 2
      // Predicated region
      $region37: #{cpu_player_forward.1} parent=5 // pred_check
        %p261 = pneg %p260
      $region38: #{cpu_player_forward.1} parent=5 // pred_check_branch
        %263 = sbr.rel (%p261) target = $region40
      $region39: #{cpu_player_forward.1} parent=5 // pred_region
        // Predicated region
        $region41: #{cpu_player_forward.1} parent=39 // pred_check
          %p264 = pneg %p38
        $region42: #{cpu_player_forward.1} parent=39 // pred_check_branch
          %266 = sbr.rel (%p264) target = $region44
        $region43: #{cpu_player_forward.1} parent=39 // pred_region
          %s267 = smul.u32 4, %s18
          %p268 = scmp.lt.s32.totalorder %s267, 7
          %s269 = scalar_select %p268, %s267, 7
          %s270 = smul.addr %s269, 3
          %s271 = smul.addr %s270, 8
          %s272 = scalar_lea.vmem %s0, %s271
          %s273 = smul.u32 4, %s18
        $region44: #{cpu_player_forward.1} parent=39 // pred_fallthru
          _
      $region40: #{cpu_player_forward.1} parent=5 // pred_fallthru
        _
      %p274 = scmp.le.s32.totalorder 1, %s18
      %p275 = scmp.lt.s32.totalorder %s18, 3
      %p276 = pnand %p274, %p275
      %p277 = pneg %p276
      // Predicated region
      $region45: #{cpu_player_forward.1} parent=5 // pred_check
        _
      $region46: #{cpu_player_forward.1} parent=5 // pred_check_branch
        %279 = sbr.rel (%p276) target = $region48
      $region47: #{cpu_player_forward.1} parent=5 // pred_region
        %s280 = ssub.s32 %s18, 1
        // Predicated region
        $region49: #{cpu_player_forward.1} parent=47 // pred_check
          %p281 = pneg %p65
        $region50: #{cpu_player_forward.1} parent=47 // pred_check_branch
          %283 = sbr.rel (%p281) target = $region52
        $region51: #{cpu_player_forward.1} parent=47 // pred_region
          %285 = dma.done [#allocation3], 160
        $region52: #{cpu_player_forward.1} parent=47 // pred_fallthru
          _
        // Predicated region
        $region53: #{cpu_player_forward.1} parent=47 // pred_check
          %p286 = pneg %p107
        $region54: #{cpu_player_forward.1} parent=47 // pred_check_branch
          %288 = sbr.rel (%p286) target = $region56
        $region55: #{cpu_player_forward.1} parent=47 // pred_region
          %290 = dma.done [#allocation6], 768
        $region56: #{cpu_player_forward.1} parent=47 // pred_fallthru
          _
        // Predicated region
        $region57: #{cpu_player_forward.1} parent=47 // pred_check
          %p291 = pneg %p128
        $region58: #{cpu_player_forward.1} parent=47 // pred_check_branch
          %293 = sbr.rel (%p291) target = $region60
        $region59: #{cpu_player_forward.1} parent=47 // pred_region
          %295 = dma.done [#allocation6], 3072
        $region60: #{cpu_player_forward.1} parent=47 // pred_fallthru
          _
        %s296 = smul.u32 4, %s23
        %p297 = scmp.lt.s32.totalorder %s296, 7
        %s298 = scalar_select %p297, %s296, 7
        %s299 = smul.addr %s298, 3
        %s300 = smul.addr %s299, 8
        %s301 = scalar_lea.vmem %s0, %s300
        %p302 = pneg %p44
        %p303 = pneg %p41
        %p304 = pneg %p65
        %p305 = pneg %p62
        %p306 = pneg %p86
        %p307 = pneg %p83
        %p308 = pneg %p107
        %p309 = pneg %p104
        %p310 = pneg %p128
        %p311 = pneg %p125
        %p312 = pneg %p149
        %p313 = pneg %p146
        %p314 = pneg %p170
        %p315 = pneg %p167
        %p316 = pneg %p196
        %p317 = pneg %p193
        %s318 = sand.u32 %s183, 1
        %s319 = scalar_lea.sflag [#allocation4], %s318
        %s320 = sand.u32 %s183, 1
        %s321 = smul.addr %s320, 32
        %s322 = scalar_lea.vmem [#allocation8], %s321
        %s323 = smul.u32 4, %s23
        %p324 = scmp.lt.s32.totalorder %s323, 7
        %s325 = scalar_select %p324, %s323, 7
        %s326 = smul.addr %s325, 3
        %s327 = smul.addr %s326, 8
        %s328 = scalar_lea.vmem %s0, %s327
        %s329 = smul.u32 4, %s23
        %s330 = smul.u32 4, %s23
        %v332 = vld [vmem:[%s328] sm:$0xff]
        %v333 = vld [vmem:[%s328 + $0x8] sm:$0xff]
        %v334 = vld [vmem:[%s328 + $0x10] sm:$0xff]
        %v335 = vld [vmem:[%s328 + $0x18] sm:$0xff]
        %v336 = vld [vmem:[%s328 + $0x20] sm:$0xff]
        %v337 = vld [vmem:[%s328 + $0x28] sm:$0xff]
        %v338 = vld [vmem:[%s328 + $0x30] sm:$0xff]
        %v339 = vld [vmem:[%s328 + $0x38] sm:$0xff]
        %v340 = vld [vmem:[%s328 + $0x40] sm:$0xff]
        %v341 = vld [vmem:[%s328 + $0x48] sm:$0xff]
        %v342 = vld [vmem:[%s328 + $0x50] sm:$0xff]
        %v343 = vld [vmem:[%s328 + $0x58] sm:$0xff]
        %352 = vrot.lane.b32.xlu0 %v333, 32
        %v353 = vpop.permute.xlu0 %352
        %354 = vrot.lane.b32.xlu0 %v334, 32
        %v355 = vpop.permute.xlu0 %354
        %356 = vrot.lane.b32.xlu0 %v336, 32
        %v357 = vpop.permute.xlu0 %356
        %358 = vrot.lane.b32.xlu0 %v337, 32
        %v359 = vpop.permute.xlu0 %358
        %360 = vrot.lane.b32.xlu0 %v339, 32
        %v361 = vpop.permute.xlu0 %360
        %362 = vrot.lane.b32.xlu0 %v340, 32
        %v363 = vpop.permute.xlu0 %362
        %364 = vrot.lane.b32.xlu0 %v342, 32
        %v365 = vpop.permute.xlu0 %364
        %366 = vrot.lane.b32.xlu0 %v343, 32
        %v367 = vpop.permute.xlu0 %366
        %vm368 = vcmask 261120
        %v369 = vsel %vm368, %v353, %v355
        %v370 = vsel %vm368, %v357, %v359
        %v371 = vsel %vm368, %v361, %v363
        %v372 = vsel %vm368, %v365, %v367
        %377 = vrot.lane.b32.xlu0 %v333, 80
        %v378 = vpop.permute.xlu0 %377
        %379 = vrot.lane.b32.xlu0 %v334, 80
        %v380 = vpop.permute.xlu0 %379
        %381 = vrot.lane.b32.xlu0 %v336, 80
        %v382 = vpop.permute.xlu0 %381
        %383 = vrot.lane.b32.xlu0 %v337, 80
        %v384 = vpop.permute.xlu0 %383
        %385 = vrot.lane.b32.xlu0 %v339, 80
        %v386 = vpop.permute.xlu0 %385
        %387 = vrot.lane.b32.xlu0 %v340, 80
        %v388 = vpop.permute.xlu0 %387
        %389 = vrot.lane.b32.xlu0 %v342, 80
        %v390 = vpop.permute.xlu0 %389
        %391 = vrot.lane.b32.xlu0 %v343, 80
        %v392 = vpop.permute.xlu0 %391
        %vm393 = vcmask 654336
        %v394 = vsel %vm393, %v378, %v380
        %v395 = vsel %vm393, %v382, %v384
        %v396 = vsel %vm393, %v386, %v388
        %v397 = vsel %vm393, %v390, %v392
        %vm402 = vcmask 392192
        %v403 = vsel %vm402, %v369, %v394
        %v404 = vsel %vm402, %v370, %v395
        %v405 = vsel %vm402, %v371, %v396
        %v406 = vsel %vm402, %v372, %v397
        %v407 = vpack.c.bf16 %v337, %v334
        %v408 = vpack.c.bf16 %v343, %v340
        %v409 = vld [vmem:[#allocation2] sm:$0xff]
        %v410 = vld [vmem:[#allocation2 + $0x8] sm:$0x3]
        %413 = vrot.lane.b32.xlu0 %v407, 112
        %v414 = vpop.permute.xlu0 %413
        %415 = vrot.lane.b32.xlu0 %v408, 112
        %v416 = vpop.permute.xlu0 %415
        %418 = vst [vmem:[#allocation1] ss:$4 sm:$0xff] %v409
        %s420 = scalar_lea.vmem [#allocation1], 32
        %421 = vst [vmem:[%s420] ss:$4 sm:$0xff] %v410
        %v422 = vld.sshfl [vmem:[#allocation1] sm:$0xff pattern:$0x73625140]
        %v423 = vld.sshfl [vmem:[#allocation1 + $0x8] sm:$0xff pattern:$0x73625140]
        %v424 = vld.sshfl [vmem:[#allocation1 + $0x10] sm:$0xff pattern:$0x73625140]
        %v425 = vld.sshfl [vmem:[#allocation1 + $0x18] sm:$0xff pattern:$0x73625140]
        %v426 = vld.sshfl [vmem:[#allocation1 + $0x20] sm:$0xff pattern:$0x73625140]
        %vm427 = vcmask 23552
        %v429 = vsel %vm427, %v414, 0
        %v432 = vsel %vm427, %v416, 0
        %vm434 = vcmask 1040384
        %vm435 = vcmask 1041408
        %v436 = vsel %vm434, 4294967295, 65535
        %v437 = vsel %vm435, %v436, 0
        %v438 = vand.u32 %v422, %v437
        %v440 = vand.u32 %v423, %v437
        %v442 = vand.u32 %v424, %v437
        %v444 = vand.u32 %v425, %v437
        %v446 = vand.u32 %v426, %v437
        %448 = vmatpush.bf16.msra.mxu0 0
        %449 = vmatpush.bf16.msra.mxu0 0
        %450 = vmatpush.bf16.msra.mxu0 0
        %451 = vmatpush.bf16.msra.mxu0 0
        %452 = vmatpush.bf16.msra.mxu0 0
        %453 = vmatpush.bf16.msra.mxu0 0
        %454 = vmatpush.bf16.msra.mxu0 0
        %455 = vmatpush.bf16.msra.mxu0 %v438
        %456 = vmatmul.bf16.gmra.mxu0 %v429
        %v457 = vpop.f32.mrf.mxu0
        %v458 = vadd.f32 0.0, %v457
        %v459 = vpop.f32.mrf.mxu0
        %v460 = vadd.f32 0.0, %v459
        %461 = vmatmul.bf16.gmra.mxu0 %v432
        %v462 = vpop.f32.mrf.mxu0
        %v463 = vadd.f32 0.0, %v462
        %v464 = vpop.f32.mrf.mxu0
        %v465 = vadd.f32 0.0, %v464
        %466 = vdwg.mxu0
        %467 = vmatpush.bf16.msra.mxu0 0
        %468 = vmatpush.bf16.msra.mxu0 0
        %469 = vmatpush.bf16.msra.mxu0 0
        %470 = vmatpush.bf16.msra.mxu0 0
        %471 = vmatpush.bf16.msra.mxu0 0
        %472 = vmatpush.bf16.msra.mxu0 0
        %473 = vmatpush.bf16.msra.mxu0 0
        %474 = vmatpush.bf16.msra.mxu0 %v440
        %475 = vmatmul.bf16.gmra.mxu0 %v429
        %v476 = vpop.f32.mrf.mxu0
        %v477 = vadd.f32 0.0, %v476
        %v478 = vpop.f32.mrf.mxu0
        %v479 = vadd.f32 0.0, %v478
        %480 = vmatmul.bf16.gmra.mxu0 %v432
        %v481 = vpop.f32.mrf.mxu0
        %v482 = vadd.f32 0.0, %v481
        %v483 = vpop.f32.mrf.mxu0
        %v484 = vadd.f32 0.0, %v483
        %485 = vdwg.mxu0
        %486 = vmatpush.bf16.msra.mxu0 0
        %487 = vmatpush.bf16.msra.mxu0 0
        %488 = vmatpush.bf16.msra.mxu0 0
        %489 = vmatpush.bf16.msra.mxu0 0
        %490 = vmatpush.bf16.msra.mxu0 0
        %491 = vmatpush.bf16.msra.mxu0 0
        %492 = vmatpush.bf16.msra.mxu0 0
        %493 = vmatpush.bf16.msra.mxu0 %v442
        %494 = vmatmul.bf16.gmra.mxu0 %v429
        %v495 = vpop.f32.mrf.mxu0
        %v496 = vadd.f32 0.0, %v495
        %v497 = vpop.f32.mrf.mxu0
        %v498 = vadd.f32 0.0, %v497
        %499 = vmatmul.bf16.gmra.mxu0 %v432
        %v500 = vpop.f32.mrf.mxu0
        %v501 = vadd.f32 0.0, %v500
        %v502 = vpop.f32.mrf.mxu0
        %v503 = vadd.f32 0.0, %v502
        %504 = vdwg.mxu0
        %505 = vmatpush.bf16.msra.mxu0 0
        %506 = vmatpush.bf16.msra.mxu0 0
        %507 = vmatpush.bf16.msra.mxu0 0
        %508 = vmatpush.bf16.msra.mxu0 0
        %509 = vmatpush.bf16.msra.mxu0 0
        %510 = vmatpush.bf16.msra.mxu0 0
        %511 = vmatpush.bf16.msra.mxu0 0
        %512 = vmatpush.bf16.msra.mxu0 %v444
        %513 = vmatmul.bf16.gmra.mxu0 %v429
        %v514 = vpop.f32.mrf.mxu0
        %v515 = vadd.f32 0.0, %v514
        %v516 = vpop.f32.mrf.mxu0
        %v517 = vadd.f32 0.0, %v516
        %518 = vmatmul.bf16.gmra.mxu0 %v432
        %v519 = vpop.f32.mrf.mxu0
        %v520 = vadd.f32 0.0, %v519
        %v521 = vpop.f32.mrf.mxu0
        %v522 = vadd.f32 0.0, %v521
        %523 = vdwg.mxu0
        %524 = vmatpush.bf16.msra.mxu0 0
        %525 = vmatpush.bf16.msra.mxu0 0
        %526 = vmatpush.bf16.msra.mxu0 0
        %527 = vmatpush.bf16.msra.mxu0 0
        %528 = vmatpush.bf16.msra.mxu0 0
        %529 = vmatpush.bf16.msra.mxu0 0
        %530 = vmatpush.bf16.msra.mxu0 0
        %531 = vmatpush.bf16.msra.mxu0 %v446
        %532 = vmatmul.bf16.gmra.mxu0 %v429
        %v533 = vpop.f32.mrf.mxu0
        %v534 = vadd.f32 0.0, %v533
        %v535 = vpop.f32.mrf.mxu0
        %v536 = vadd.f32 0.0, %v535
        %537 = vmatmul.bf16.gmra.mxu0 %v432
        %v538 = vpop.f32.mrf.mxu0
        %v539 = vadd.f32 0.0, %v538
        %v540 = vpop.f32.mrf.mxu0
        %v541 = vadd.f32 0.0, %v540
        %542 = vdwg.mxu0
        %v543 = vmul.f32 %v332, %v458
        %v544 = vmul.f32 %v333, %v477
        %v545 = vmul.f32 %v332, %v496
        %v546 = vmul.f32 %v333, %v515
        %v547 = vmul.f32 %v335, %v460
        %v548 = vmul.f32 %v336, %v479
        %v549 = vmul.f32 %v335, %v498
        %v550 = vmul.f32 %v336, %v517
        %v551 = vmul.f32 %v338, %v463
        %v552 = vmul.f32 %v339, %v482
        %v553 = vmul.f32 %v338, %v501
        %v554 = vmul.f32 %v339, %v520
        %v555 = vmul.f32 %v341, %v465
        %v556 = vmul.f32 %v342, %v484
        %v557 = vmul.f32 %v341, %v503
        %v558 = vmul.f32 %v342, %v522
        %v559 = vpack.c.bf16 %v547, %v543
        %v560 = vpack.c.bf16 %v548, %v544
        %v561 = vpack.c.bf16 %v549, %v545
        %v562 = vpack.c.bf16 %v550, %v546
        %v563 = vpack.c.bf16 %v555, %v551
        %v564 = vpack.c.bf16 %v556, %v552
        %v565 = vpack.c.bf16 %v557, %v553
        %v566 = vpack.c.bf16 %v558, %v554
        %v567 = vld [vmem:[%s2] sm:$0xf]
        %v568 = vld [vmem:[%s2 + $0x4] sm:$0xf]
        %v569 = vld [vmem:[%s2 + $0x8] sm:$0xf]
        %v570 = vld [vmem:[%s2 + $0xc] sm:$0xf]
        %v571 = vld [vmem:[%s2 + $0x10] sm:$0xf]
        %v572 = vld [vmem:[%s2 + $0x14] sm:$0xf]
        %v573 = vld [vmem:[%s2 + $0x18] sm:$0xf]
        %v574 = vld [vmem:[%s2 + $0x1c] sm:$0xf]
        %v575 = vld [vmem:[%s2 + $0x20] sm:$0xf]
        %v576 = vld [vmem:[%s2 + $0x24] sm:$0xf]
        %v577 = vld [vmem:[%s2 + $0x28] sm:$0xf]
        %v578 = vld [vmem:[%s2 + $0x2c] sm:$0xf]
        %v579 = vld [vmem:[%s2 + $0x30] sm:$0xf]
        %v580 = vld [vmem:[%s2 + $0x34] sm:$0xf]
        %v581 = vld [vmem:[%s2 + $0x38] sm:$0xf]
        %v582 = vld [vmem:[%s2 + $0x3c] sm:$0xf]
        %v583 = vld [vmem:[%s2 + $0x40] sm:$0xf]
        %v584 = vld [vmem:[%s2 + $0x44] sm:$0xf]
        %v585 = vld [vmem:[%s2 + $0x48] sm:$0xf]
        %v586 = vld [vmem:[%s2 + $0x4c] sm:$0xf]
        %v587 = vld [vmem:[%s2 + $0x50] sm:$0xf]
        %v588 = vld [vmem:[%s2 + $0x54] sm:$0xf]
        %v589 = vld [vmem:[%s2 + $0x58] sm:$0xf]
        %v590 = vld [vmem:[%s2 + $0x5c] sm:$0xf]
        %v591 = vld [vmem:[%s2 + $0x60] sm:$0xf]
        %v592 = vld [vmem:[%s2 + $0x64] sm:$0xf]
        %v593 = vld [vmem:[%s2 + $0x68] sm:$0xf]
        %v594 = vld [vmem:[%s2 + $0x6c] sm:$0xf]
        %v595 = vld [vmem:[%s2 + $0x70] sm:$0xf]
        %v596 = vld [vmem:[%s2 + $0x74] sm:$0xf]
        %v597 = vld [vmem:[%s2 + $0x78] sm:$0xf]
        %v598 = vld [vmem:[%s2 + $0x7c] sm:$0xf]
        %v599 = vld [vmem:[%s2 + $0x80] sm:$0xf]
        %v600 = vld [vmem:[%s2 + $0x84] sm:$0xf]
        %v601 = vld [vmem:[%s2 + $0x88] sm:$0xf]
        %v602 = vld [vmem:[%s2 + $0x8c] sm:$0xf]
        %v603 = vld [vmem:[%s2 + $0x90] sm:$0xf]
        %v604 = vld [vmem:[%s2 + $0x94] sm:$0xf]
        %v605 = vld [vmem:[%s2 + $0x98] sm:$0xf]
        %v606 = vld [vmem:[%s2 + $0x9c] sm:$0xf]
        %v607 = vld [vmem:[%s2 + $0xa0] sm:$0xf]
        %v608 = vld [vmem:[%s2 + $0xa4] sm:$0xf]
        %v609 = vld [vmem:[%s2 + $0xa8] sm:$0xf]
        %v610 = vld [vmem:[%s2 + $0xac] sm:$0xf]
        %v611 = vld [vmem:[%s2 + $0xb0] sm:$0xf]
        %v612 = vld [vmem:[%s2 + $0xb4] sm:$0xf]
        %v613 = vld [vmem:[%s2 + $0xb8] sm:$0xf]
        %v614 = vld [vmem:[%s2 + $0xbc] sm:$0xf]
        %v615 = vld [vmem:[%s2 + $0xc0] sm:$0xf]
        %v616 = vld [vmem:[%s2 + $0xc4] sm:$0xf]
        %v617 = vld [vmem:[%s2 + $0xc8] sm:$0xf]
        %v618 = vld [vmem:[%s2 + $0xcc] sm:$0xf]
        %v619 = vld [vmem:[%s2 + $0xd0] sm:$0xf]
        %v620 = vld [vmem:[%s2 + $0xd4] sm:$0xf]
        %v621 = vld [vmem:[%s2 + $0xd8] sm:$0xf]
        %v622 = vld [vmem:[%s2 + $0xdc] sm:$0xf]
        %v623 = vld [vmem:[%s2 + $0xe0] sm:$0xf]
        %v624 = vld [vmem:[%s2 + $0xe4] sm:$0xf]
        %v625 = vld [vmem:[%s2 + $0xe8] sm:$0xf]
        %v626 = vld [vmem:[%s2 + $0xec] sm:$0xf]
        %v627 = vld [vmem:[%s2 + $0xf0] sm:$0xf]
        %v628 = vld [vmem:[%s2 + $0xf4] sm:$0xf]
        %v629 = vld [vmem:[%s2 + $0xf8] sm:$0xf]
        %v630 = vld [vmem:[%s2 + $0xfc] sm:$0xf]
        %v631 = vsub.f32 %v403, 1.0
        %v632 = vsub.f32 %v404, 1.0
        %v633 = vsub.f32 %v405, 1.0
        %v634 = vsub.f32 %v406, 1.0
        %v635 = vmul.f32 %v631, 1e+09
        %v636 = vmul.f32 %v632, 1e+09
        %v637 = vmul.f32 %v633, 1e+09
        %v638 = vmul.f32 %v634, 1e+09
        %v703 = vunpack.c.l.b16 %v567
        %v704 = vunpack.c.l.b16 %v568
        %v705 = vunpack.c.l.b16 %v569
        %v706 = vunpack.c.l.b16 %v570
        %v707 = vunpack.c.l.b16 %v571
        %v708 = vunpack.c.l.b16 %v572
        %v709 = vunpack.c.l.b16 %v573
        %v710 = vunpack.c.l.b16 %v574
        %v711 = vunpack.c.l.b16 %v575
        %v712 = vunpack.c.l.b16 %v576
        %v713 = vunpack.c.l.b16 %v577
        %v714 = vunpack.c.l.b16 %v578
        %v715 = vunpack.c.l.b16 %v579
        %v716 = vunpack.c.l.b16 %v580
        %v717 = vunpack.c.l.b16 %v581
        %v718 = vunpack.c.l.b16 %v582
        %v719 = vunpack.c.l.b16 %v583
        %v720 = vunpack.c.l.b16 %v584
        %v721 = vunpack.c.l.b16 %v585
        %v722 = vunpack.c.l.b16 %v586
        %v723 = vunpack.c.l.b16 %v587
        %v724 = vunpack.c.l.b16 %v588
        %v725 = vunpack.c.l.b16 %v589
        %v726 = vunpack.c.l.b16 %v590
        %v727 = vunpack.c.l.b16 %v591
        %v728 = vunpack.c.l.b16 %v592
        %v729 = vunpack.c.l.b16 %v593
        %v730 = vunpack.c.l.b16 %v594
        %v731 = vunpack.c.l.b16 %v595
        %v732 = vunpack.c.l.b16 %v596
        %v733 = vunpack.c.l.b16 %v597
        %v734 = vunpack.c.l.b16 %v598
        %v735 = vunpack.c.l.b16 %v599
        %v736 = vunpack.c.l.b16 %v600
        %v737 = vunpack.c.l.b16 %v601
        %v738 = vunpack.c.l.b16 %v602
        %v739 = vunpack.c.l.b16 %v603
        %v740 = vunpack.c.l.b16 %v604
        %v741 = vunpack.c.l.b16 %v605
        %v742 = vunpack.c.l.b16 %v606
        %v743 = vunpack.c.l.b16 %v607
        %v744 = vunpack.c.l.b16 %v608
        %v745 = vunpack.c.l.b16 %v609
        %v746 = vunpack.c.l.b16 %v610
        %v747 = vunpack.c.l.b16 %v611
        %v748 = vunpack.c.l.b16 %v612
        %v749 = vunpack.c.l.b16 %v613
        %v750 = vunpack.c.l.b16 %v614
        %v751 = vunpack.c.l.b16 %v615
        %v752 = vunpack.c.l.b16 %v616
        %v753 = vunpack.c.l.b16 %v617
        %v754 = vunpack.c.l.b16 %v618
        %v755 = vunpack.c.l.b16 %v619
        %v756 = vunpack.c.l.b16 %v620
        %v757 = vunpack.c.l.b16 %v621
        %v758 = vunpack.c.l.b16 %v622
        %v759 = vunpack.c.l.b16 %v623
        %v760 = vunpack.c.l.b16 %v624
        %v761 = vunpack.c.l.b16 %v625
        %v762 = vunpack.c.l.b16 %v626
        %v763 = vunpack.c.l.b16 %v627
        %v764 = vunpack.c.l.b16 %v628
        %v765 = vunpack.c.l.b16 %v629
        %v766 = vunpack.c.l.b16 %v630
        %v767 = vpack.c.b16 %v704, %v703
        %v768 = vpack.c.b16 %v706, %v705
        %v769 = vpack.c.b16 %v708, %v707
        %v770 = vpack.c.b16 %v710, %v709
        %v771 = vpack.c.b16 %v712, %v711
        %v772 = vpack.c.b16 %v714, %v713
        %v773 = vpack.c.b16 %v716, %v715
        %v774 = vpack.c.b16 %v718, %v717
        %v775 = vpack.c.b16 %v720, %v719
        %v776 = vpack.c.b16 %v722, %v721
        %v777 = vpack.c.b16 %v724, %v723
        %v778 = vpack.c.b16 %v726, %v725
        %v779 = vpack.c.b16 %v728, %v727
        %v780 = vpack.c.b16 %v730, %v729
        %v781 = vpack.c.b16 %v732, %v731
        %v782 = vpack.c.b16 %v734, %v733
        %v783 = vpack.c.b16 %v736, %v735
        %v784 = vpack.c.b16 %v738, %v737
        %v785 = vpack.c.b16 %v740, %v739
        %v786 = vpack.c.b16 %v742, %v741
        %v787 = vpack.c.b16 %v744, %v743
        %v788 = vpack.c.b16 %v746, %v745
        %v789 = vpack.c.b16 %v748, %v747
        %v790 = vpack.c.b16 %v750, %v749
        %v791 = vpack.c.b16 %v752, %v751
        %v792 = vpack.c.b16 %v754, %v753
        %v793 = vpack.c.b16 %v756, %v755
        %v794 = vpack.c.b16 %v758, %v757
        %v795 = vpack.c.b16 %v760, %v759
        %v796 = vpack.c.b16 %v762, %v761
        %v797 = vpack.c.b16 %v764, %v763
        %v798 = vpack.c.b16 %v766, %v765
        %831 = vmatpush.bf16.msra.mxu0 %v774
        %832 = vmatpush.bf16.msra.mxu0 %v773
        %833 = vmatpush.bf16.msra.mxu0 %v772
        %834 = vmatpush.bf16.msra.mxu0 %v771
        %835 = vmatpush.bf16.msra.mxu0 %v770
        %836 = vmatpush.bf16.msra.mxu0 %v769
        %837 = vmatpush.bf16.msra.mxu0 %v768
        %838 = vmatpush.bf16.msra.mxu0 %v767
        %839 = vmatmul.bf16.gmra.mxu0 %v559
        %v840 = vpop.f32.mrf.mxu0
        %v841 = vadd.f32 %v635, %v840
        %v842 = vpop.f32.mrf.mxu0
        %v843 = vadd.f32 %v636, %v842
        %844 = vmatmul.bf16.gmra.mxu0 %v563
        %v845 = vpop.f32.mrf.mxu0
        %v846 = vadd.f32 %v637, %v845
        %v847 = vpop.f32.mrf.mxu0
        %v848 = vadd.f32 %v638, %v847
        %849 = vdwg.mxu0
        %850 = vmatpush.bf16.msra.mxu0 %v782
        %851 = vmatpush.bf16.msra.mxu0 %v781
        %852 = vmatpush.bf16.msra.mxu0 %v780
        %853 = vmatpush.bf16.msra.mxu0 %v779
        %854 = vmatpush.bf16.msra.mxu0 %v778
        %855 = vmatpush.bf16.msra.mxu0 %v777
        %856 = vmatpush.bf16.msra.mxu0 %v776
        %857 = vmatpush.bf16.msra.mxu0 %v775
        %858 = vmatmul.bf16.gmra.mxu0 %v560
        %v859 = vpop.f32.mrf.mxu0
        %v860 = vadd.f32 %v841, %v859
        %v861 = vpop.f32.mrf.mxu0
        %v862 = vadd.f32 %v843, %v861
        %863 = vmatmul.bf16.gmra.mxu0 %v564
        %v864 = vpop.f32.mrf.mxu0
        %v865 = vadd.f32 %v846, %v864
        %v866 = vpop.f32.mrf.mxu0
        %v867 = vadd.f32 %v848, %v866
        %868 = vdwg.mxu0
        %869 = vmatpush.bf16.msra.mxu0 %v790
        %870 = vmatpush.bf16.msra.mxu0 %v789
        %871 = vmatpush.bf16.msra.mxu0 %v788
        %872 = vmatpush.bf16.msra.mxu0 %v787
        %873 = vmatpush.bf16.msra.mxu0 %v786
        %874 = vmatpush.bf16.msra.mxu0 %v785
        %875 = vmatpush.bf16.msra.mxu0 %v784
        %876 = vmatpush.bf16.msra.mxu0 %v783
        %877 = vmatmul.bf16.gmra.mxu0 %v561
        %v878 = vpop.f32.mrf.mxu0
        %v879 = vadd.f32 %v860, %v878
        %v880 = vpop.f32.mrf.mxu0
        %v881 = vadd.f32 %v862, %v880
        %882 = vmatmul.bf16.gmra.mxu0 %v565
        %v883 = vpop.f32.mrf.mxu0
        %v884 = vadd.f32 %v865, %v883
        %v885 = vpop.f32.mrf.mxu0
        %v886 = vadd.f32 %v867, %v885
        %887 = vdwg.mxu0
        %888 = vmatpush.bf16.msra.mxu0 %v798
        %889 = vmatpush.bf16.msra.mxu0 %v797
        %890 = vmatpush.bf16.msra.mxu0 %v796
        %891 = vmatpush.bf16.msra.mxu0 %v795
        %892 = vmatpush.bf16.msra.mxu0 %v794
        %893 = vmatpush.bf16.msra.mxu0 %v793
        %894 = vmatpush.bf16.msra.mxu0 %v792
        %895 = vmatpush.bf16.msra.mxu0 %v791
        %896 = vmatmul.bf16.gmra.mxu0 %v562
        %v897 = vpop.f32.mrf.mxu0
        %v898 = vadd.f32 %v879, %v897
        %v899 = vpop.f32.mrf.mxu0
        %v900 = vadd.f32 %v881, %v899
        %901 = vmatmul.bf16.gmra.mxu0 %v566
        %v902 = vpop.f32.mrf.mxu0
        %v903 = vadd.f32 %v884, %v902
        %v904 = vpop.f32.mrf.mxu0
        %v905 = vadd.f32 %v886, %v904
        %906 = vdwg.mxu0
        %vm907 = vcmask 785408
        %v908 = vsel %vm907, %v898, -inf
        %909 = vmax.xlane.f32.xlu0 %v908
        %v910 = vpop.xlane.xlu0 %909
        %v911 = vsel %vm907, %v900, -inf
        %912 = vmax.xlane.f32.xlu0 %v911
        %v913 = vpop.xlane.xlu0 %912
        %v914 = vsel %vm907, %v903, -inf
        %915 = vmax.xlane.f32.xlu0 %v914
        %v916 = vpop.xlane.xlu0 %915
        %v917 = vsel %vm907, %v905, -inf
        %918 = vmax.xlane.f32.xlu0 %v917
        %v919 = vpop.xlane.xlu0 %918
        %v920 = vsub.f32 %v898, %v910
        %v921 = vsub.f32 %v900, %v913
        %v922 = vsub.f32 %v903, %v916
        %v923 = vsub.f32 %v905, %v919
        %v924 = vmul.f32 %v920, 1.442695
        %v925 = vpow.pop %v924
        %v926 = vmul.f32 %v921, 1.442695
        %v927 = vpow.pop %v926
        %v928 = vmul.f32 %v922, 1.442695
        %v929 = vpow.pop %v928
        %v930 = vmul.f32 %v923, 1.442695
        %v931 = vpow.pop %v930
        %v932 = vpack.c.bf16 %v927, %v925
        %v933 = vpack.c.bf16 %v931, %v929
        %v934 = vld [vmem:[#allocation5] sm:$0xf]
        %v935 = vld [vmem:[#allocation5 + $0x4] sm:$0xf]
        %v936 = vld [vmem:[#allocation5 + $0x8] sm:$0xf]
        %v937 = vld [vmem:[#allocation5 + $0xc] sm:$0xf]
        %v938 = vld [vmem:[#allocation5 + $0x10] sm:$0xf]
        %v939 = vld [vmem:[#allocation5 + $0x14] sm:$0xf]
        %v940 = vld [vmem:[#allocation5 + $0x18] sm:$0xf]
        %v941 = vld [vmem:[#allocation5 + $0x1c] sm:$0xf]
        %v942 = vld [vmem:[#allocation5 + $0x20] sm:$0xf]
        %v943 = vld [vmem:[#allocation5 + $0x24] sm:$0xf]
        %v944 = vld [vmem:[#allocation5 + $0x28] sm:$0xf]
        %v945 = vld [vmem:[#allocation5 + $0x2c] sm:$0xf]
        %v958 = vunpack.c.l.b16 %v934
        %v959 = vunpack.c.l.b16 %v935
        %v960 = vunpack.c.l.b16 %v936
        %v961 = vunpack.c.l.b16 %v937
        %v962 = vunpack.c.l.b16 %v938
        %v963 = vunpack.c.l.b16 %v939
        %v964 = vunpack.c.l.b16 %v940
        %v965 = vunpack.c.l.b16 %v941
        %v966 = vunpack.c.l.b16 %v942
        %v967 = vunpack.c.l.b16 %v943
        %v968 = vunpack.c.l.b16 %v944
        %v969 = vunpack.c.l.b16 %v945
        %v970 = vpack.c.b16 %v959, %v958
        %v971 = vpack.c.b16 %v961, %v960
        %v972 = vpack.c.b16 %v963, %v962
        %v973 = vpack.c.b16 %v965, %v964
        %v974 = vpack.c.b16 %v967, %v966
        %v975 = vpack.c.b16 %v969, %v968
        %v983 = vsel %vm907, %v932, 0
        %v986 = vsel %vm907, %v933, 0
        %988 = vmatpush.bf16.msra.mxu0 0
        %989 = vmatpush.bf16.msra.mxu0 0
        %990 = vmatpush.bf16.msra.mxu0 %v975
        %991 = vmatpush.bf16.msra.mxu0 %v974
        %992 = vmatpush.bf16.msra.mxu0 %v973
        %993 = vmatpush.bf16.msra.mxu0 %v972
        %994 = vmatpush.bf16.msra.mxu0 %v971
        %995 = vmatpush.bf16.msra.mxu0 %v970
        %996 = vmatmul.bf16.gmra.mxu0 %v983
        %v997 = vpop.f32.mrf.mxu0
        %v998 = vadd.f32 0.0, %v997
        %v999 = vpop.f32.mrf.mxu0
        %v1000 = vadd.f32 0.0, %v999
        %1001 = vmatmul.bf16.gmra.mxu0 %v986
        %v1002 = vpop.f32.mrf.mxu0
        %v1003 = vadd.f32 0.0, %v1002
        %v1004 = vpop.f32.mrf.mxu0
        %v1005 = vadd.f32 0.0, %v1004
        %1006 = vdwg.mxu0
        %v1007 = vrcp.pop %v998
        %v1008 = vrcp.pop %v1000
        %v1009 = vrcp.pop %v1003
        %v1010 = vrcp.pop %v1005
        %v1011 = vmul.f32 %v925, %v1007
        %v1012 = vmul.f32 %v927, %v1008
        %v1013 = vmul.f32 %v929, %v1009
        %v1014 = vmul.f32 %v931, %v1010
        %v1015 = vpack.c.bf16 %v1012, %v1011
        %v1016 = vpack.c.bf16 %v1014, %v1013
        %v1017 = vld [vmem:[#allocation7] sm:$0xff]
        %v1018 = vld [vmem:[#allocation7 + $0x8] sm:$0xff]
        %v1019 = vld [vmem:[#allocation7 + $0x10] sm:$0xff]
        %v1020 = vld [vmem:[#allocation7 + $0x18] sm:$0xff]
        %v1021 = vld [vmem:[#allocation7 + $0x20] sm:$0xff]
        %v1022 = vld [vmem:[#allocation7 + $0x28] sm:$0xff]
        %v1023 = vld [vmem:[#allocation7 + $0x30] sm:$0xff]
        %v1024 = vld [vmem:[#allocation7 + $0x38] sm:$0xff]
        %v1025 = vld [vmem:[#allocation7 + $0x40] sm:$0xff]
        %v1026 = vld [vmem:[#allocation7 + $0x48] sm:$0xff]
        %v1027 = vld [vmem:[#allocation7 + $0x50] sm:$0xff]
        %v1028 = vld [vmem:[#allocation7 + $0x58] sm:$0xff]
        %v1029 = vld [vmem:[#allocation7 + $0x60] sm:$0xff]
        %v1030 = vld [vmem:[#allocation7 + $0x68] sm:$0xff]
        %v1031 = vld [vmem:[#allocation7 + $0x70] sm:$0xff]
        %v1032 = vld [vmem:[#allocation7 + $0x78] sm:$0xff]
        %v1033 = vld [vmem:[#allocation7 + $0x80] sm:$0xff]
        %v1034 = vld [vmem:[#allocation7 + $0x88] sm:$0xff]
        %v1035 = vld [vmem:[#allocation7 + $0x90] sm:$0xff]
        %v1036 = vld [vmem:[#allocation7 + $0x98] sm:$0xff]
        %v1037 = vld [vmem:[#allocation7 + $0xa0] sm:$0xff]
        %v1038 = vld [vmem:[#allocation7 + $0xa8] sm:$0xff]
        %v1039 = vld [vmem:[#allocation7 + $0xb0] sm:$0xff]
        %v1040 = vld [vmem:[#allocation7 + $0xb8] sm:$0xff]
        %v1065 = vunpack.c.l.b16 %v1017
        %v1066 = vunpack.c.h.b16 %v1017
        %v1067 = vunpack.c.l.b16 %v1018
        %v1068 = vunpack.c.h.b16 %v1018
        %v1069 = vunpack.c.l.b16 %v1019
        %v1070 = vunpack.c.h.b16 %v1019
        %v1071 = vunpack.c.l.b16 %v1020
        %v1072 = vunpack.c.h.b16 %v1020
        %v1073 = vunpack.c.l.b16 %v1021
        %v1074 = vunpack.c.h.b16 %v1021
        %v1075 = vunpack.c.l.b16 %v1022
        %v1076 = vunpack.c.h.b16 %v1022
        %v1077 = vunpack.c.l.b16 %v1023
        %v1078 = vunpack.c.h.b16 %v1023
        %v1079 = vunpack.c.l.b16 %v1024
        %v1080 = vunpack.c.h.b16 %v1024
        %v1081 = vunpack.c.l.b16 %v1025
        %v1082 = vunpack.c.h.b16 %v1025
        %v1083 = vunpack.c.l.b16 %v1026
        %v1084 = vunpack.c.h.b16 %v1026
        %v1085 = vunpack.c.l.b16 %v1027
        %v1086 = vunpack.c.h.b16 %v1027
        %v1087 = vunpack.c.l.b16 %v1028
        %v1088 = vunpack.c.h.b16 %v1028
        %v1089 = vunpack.c.l.b16 %v1029
        %v1090 = vunpack.c.h.b16 %v1029
        %v1091 = vunpack.c.l.b16 %v1030
        %v1092 = vunpack.c.h.b16 %v1030
        %v1093 = vunpack.c.l.b16 %v1031
        %v1094 = vunpack.c.h.b16 %v1031
        %v1095 = vunpack.c.l.b16 %v1032
        %v1096 = vunpack.c.h.b16 %v1032
        %v1097 = vunpack.c.l.b16 %v1033
        %v1098 = vunpack.c.h.b16 %v1033
        %v1099 = vunpack.c.l.b16 %v1034
        %v1100 = vunpack.c.h.b16 %v1034
        %v1101 = vunpack.c.l.b16 %v1035
        %v1102 = vunpack.c.h.b16 %v1035
        %v1103 = vunpack.c.l.b16 %v1036
        %v1104 = vunpack.c.h.b16 %v1036
        %v1105 = vunpack.c.l.b16 %v1037
        %v1106 = vunpack.c.h.b16 %v1037
        %v1107 = vunpack.c.l.b16 %v1038
        %v1108 = vunpack.c.h.b16 %v1038
        %v1109 = vunpack.c.l.b16 %v1039
        %v1110 = vunpack.c.h.b16 %v1039
        %v1111 = vunpack.c.l.b16 %v1040
        %v1112 = vunpack.c.h.b16 %v1040
        %v1113 = vpack.c.b16 %v1069, %v1065
        %v1114 = vpack.c.b16 %v1070, %v1066
        %v1115 = vpack.c.b16 %v1071, %v1067
        %v1116 = vpack.c.b16 %v1072, %v1068
        %v1117 = vpack.c.b16 %v1077, %v1073
        %v1118 = vpack.c.b16 %v1078, %v1074
        %v1119 = vpack.c.b16 %v1079, %v1075
        %v1120 = vpack.c.b16 %v1080, %v1076
        %v1121 = vpack.c.b16 %v1085, %v1081
        %v1122 = vpack.c.b16 %v1086, %v1082
        %v1123 = vpack.c.b16 %v1087, %v1083
        %v1124 = vpack.c.b16 %v1088, %v1084
        %v1125 = vpack.c.b16 %v1093, %v1089
        %v1126 = vpack.c.b16 %v1094, %v1090
        %v1127 = vpack.c.b16 %v1095, %v1091
        %v1128 = vpack.c.b16 %v1096, %v1092
        %v1129 = vpack.c.b16 %v1101, %v1097
        %v1130 = vpack.c.b16 %v1102, %v1098
        %v1131 = vpack.c.b16 %v1103, %v1099
        %v1132 = vpack.c.b16 %v1104, %v1100
        %v1133 = vpack.c.b16 %v1109, %v1105
        %v1134 = vpack.c.b16 %v1110, %v1106
        %v1135 = vpack.c.b16 %v1111, %v1107
        %v1136 = vpack.c.b16 %v1112, %v1108
        %v1162 = vsel %vm907, %v1015, 0
        %v1165 = vsel %vm907, %v1016, 0
        %1167 = vmatpush.bf16.msra.mxu0 0
        %1168 = vmatpush.bf16.msra.mxu0 0
        %1169 = vmatpush.bf16.msra.mxu0 %v1133
        %1170 = vmatpush.bf16.msra.mxu0 %v1129
        %1171 = vmatpush.bf16.msra.mxu0 %v1125
        %1172 = vmatpush.bf16.msra.mxu0 %v1121
        %1173 = vmatpush.bf16.msra.mxu0 %v1117
        %1174 = vmatpush.bf16.msra.mxu0 %v1113
        %1175 = vmatmul.bf16.gmra.mxu0 %v1162
        %v1176 = vpop.f32.mrf.mxu0
        %v1177 = vadd.f32 0.0, %v1176
        %v1178 = vpop.f32.mrf.mxu0
        %v1179 = vadd.f32 0.0, %v1178
        %1180 = vmatmul.bf16.gmra.mxu0 %v1165
        %v1181 = vpop.f32.mrf.mxu0
        %v1182 = vadd.f32 0.0, %v1181
        %v1183 = vpop.f32.mrf.mxu0
        %v1184 = vadd.f32 0.0, %v1183
        %1185 = vdwg.mxu0
        %1186 = vmatpush.bf16.msra.mxu0 0
        %1187 = vmatpush.bf16.msra.mxu0 0
        %1188 = vmatpush.bf16.msra.mxu0 %v1134
        %1189 = vmatpush.bf16.msra.mxu0 %v1130
        %1190 = vmatpush.bf16.msra.mxu0 %v1126
        %1191 = vmatpush.bf16.msra.mxu0 %v1122
        %1192 = vmatpush.bf16.msra.mxu0 %v1118
        %1193 = vmatpush.bf16.msra.mxu0 %v1114
        %1194 = vmatmul.bf16.gmra.mxu0 %v1162
        %v1195 = vpop.f32.mrf.mxu0
        %v1196 = vadd.f32 0.0, %v1195
        %v1197 = vpop.f32.mrf.mxu0
        %v1198 = vadd.f32 0.0, %v1197
        %1199 = vmatmul.bf16.gmra.mxu0 %v1165
        %v1200 = vpop.f32.mrf.mxu0
        %v1201 = vadd.f32 0.0, %v1200
        %v1202 = vpop.f32.mrf.mxu0
        %v1203 = vadd.f32 0.0, %v1202
        %1204 = vdwg.mxu0
        %1205 = vmatpush.bf16.msra.mxu0 0
        %1206 = vmatpush.bf16.msra.mxu0 0
        %1207 = vmatpush.bf16.msra.mxu0 %v1135
        %1208 = vmatpush.bf16.msra.mxu0 %v1131
        %1209 = vmatpush.bf16.msra.mxu0 %v1127
        %1210 = vmatpush.bf16.msra.mxu0 %v1123
        %1211 = vmatpush.bf16.msra.mxu0 %v1119
        %1212 = vmatpush.bf16.msra.mxu0 %v1115
        %1213 = vmatmul.bf16.gmra.mxu0 %v1162
        %v1214 = vpop.f32.mrf.mxu0
        %v1215 = vadd.f32 0.0, %v1214
        %v1216 = vpop.f32.mrf.mxu0
        %v1217 = vadd.f32 0.0, %v1216
        %1218 = vmatmul.bf16.gmra.mxu0 %v1165
        %v1219 = vpop.f32.mrf.mxu0
        %v1220 = vadd.f32 0.0, %v1219
        %v1221 = vpop.f32.mrf.mxu0
        %v1222 = vadd.f32 0.0, %v1221
        %1223 = vdwg.mxu0
        %1224 = vmatpush.bf16.msra.mxu0 0
        %1225 = vmatpush.bf16.msra.mxu0 0
        %1226 = vmatpush.bf16.msra.mxu0 %v1136
        %1227 = vmatpush.bf16.msra.mxu0 %v1132
        %1228 = vmatpush.bf16.msra.mxu0 %v1128
        %1229 = vmatpush.bf16.msra.mxu0 %v1124
        %1230 = vmatpush.bf16.msra.mxu0 %v1120
        %1231 = vmatpush.bf16.msra.mxu0 %v1116
        %1232 = vmatmul.bf16.gmra.mxu0 %v1162
        %v1233 = vpop.f32.mrf.mxu0
        %v1234 = vadd.f32 0.0, %v1233
        %v1235 = vpop.f32.mrf.mxu0
        %v1236 = vadd.f32 0.0, %v1235
        %1237 = vmatmul.bf16.gmra.mxu0 %v1165
        %v1238 = vpop.f32.mrf.mxu0
        %v1239 = vadd.f32 0.0, %v1238
        %v1240 = vpop.f32.mrf.mxu0
        %v1241 = vadd.f32 0.0, %v1240
        %1242 = vdwg.mxu0
        %v1243 = vmul.f32 %v332, %v1177
        %v1244 = vmul.f32 %v333, %v1196
        %v1245 = vmul.f32 %v332, %v1215
        %v1246 = vmul.f32 %v333, %v1234
        %v1247 = vmul.f32 %v335, %v1179
        %v1248 = vmul.f32 %v336, %v1198
        %v1249 = vmul.f32 %v335, %v1217
        %v1250 = vmul.f32 %v336, %v1236
        %v1251 = vmul.f32 %v338, %v1182
        %v1252 = vmul.f32 %v339, %v1201
        %v1253 = vmul.f32 %v338, %v1220
        %v1254 = vmul.f32 %v339, %v1239
        %v1255 = vmul.f32 %v341, %v1184
        %v1256 = vmul.f32 %v342, %v1203
        %v1257 = vmul.f32 %v341, %v1222
        %v1258 = vmul.f32 %v342, %v1241
        %v1259 = vpack.c.bf16 %v1247, %v1243
        %v1260 = vpack.c.bf16 %v1248, %v1244
        %v1261 = vpack.c.bf16 %v1249, %v1245
        %v1262 = vpack.c.bf16 %v1250, %v1246
        %v1263 = vpack.c.bf16 %v1255, %v1251
        %v1264 = vpack.c.bf16 %v1256, %v1252
        %v1265 = vpack.c.bf16 %v1257, %v1253
        %v1266 = vpack.c.bf16 %v1258, %v1254
        %v1267 = vld [vmem:[%s5] sm:$0xf]
        %v1268 = vld [vmem:[%s5 + $0x4] sm:$0xf]
        %v1269 = vld [vmem:[%s5 + $0x8] sm:$0xf]
        %v1270 = vld [vmem:[%s5 + $0xc] sm:$0xf]
        %v1271 = vld [vmem:[%s5 + $0x10] sm:$0xf]
        %v1272 = vld [vmem:[%s5 + $0x14] sm:$0xf]
        %v1273 = vld [vmem:[%s5 + $0x18] sm:$0xf]
        %v1274 = vld [vmem:[%s5 + $0x1c] sm:$0xf]
        %v1275 = vld [vmem:[%s5 + $0x20] sm:$0xf]
        %v1276 = vld [vmem:[%s5 + $0x24] sm:$0xf]
        %v1277 = vld [vmem:[%s5 + $0x28] sm:$0xf]
        %v1278 = vld [vmem:[%s5 + $0x2c] sm:$0xf]
        %v1279 = vld [vmem:[%s5 + $0x30] sm:$0xf]
        %v1280 = vld [vmem:[%s5 + $0x34] sm:$0xf]
        %v1281 = vld [vmem:[%s5 + $0x38] sm:$0xf]
        %v1282 = vld [vmem:[%s5 + $0x3c] sm:$0xf]
        %v1283 = vld [vmem:[%s5 + $0x40] sm:$0xf]
        %v1284 = vld [vmem:[%s5 + $0x44] sm:$0xf]
        %v1285 = vld [vmem:[%s5 + $0x48] sm:$0xf]
        %v1286 = vld [vmem:[%s5 + $0x4c] sm:$0xf]
        %v1287 = vld [vmem:[%s5 + $0x50] sm:$0xf]
        %v1288 = vld [vmem:[%s5 + $0x54] sm:$0xf]
        %v1289 = vld [vmem:[%s5 + $0x58] sm:$0xf]
        %v1290 = vld [vmem:[%s5 + $0x5c] sm:$0xf]
        %v1291 = vld [vmem:[%s5 + $0x60] sm:$0xf]
        %v1292 = vld [vmem:[%s5 + $0x64] sm:$0xf]
        %v1293 = vld [vmem:[%s5 + $0x68] sm:$0xf]
        %v1294 = vld [vmem:[%s5 + $0x6c] sm:$0xf]
        %v1295 = vld [vmem:[%s5 + $0x70] sm:$0xf]
        %v1296 = vld [vmem:[%s5 + $0x74] sm:$0xf]
        %v1297 = vld [vmem:[%s5 + $0x78] sm:$0xf]
        %v1298 = vld [vmem:[%s5 + $0x7c] sm:$0xf]
        %v1299 = vld [vmem:[%s5 + $0x80] sm:$0xf]
        %v1300 = vld [vmem:[%s5 + $0x84] sm:$0xf]
        %v1301 = vld [vmem:[%s5 + $0x88] sm:$0xf]
        %v1302 = vld [vmem:[%s5 + $0x8c] sm:$0xf]
        %v1303 = vld [vmem:[%s5 + $0x90] sm:$0xf]
        %v1304 = vld [vmem:[%s5 + $0x94] sm:$0xf]
        %v1305 = vld [vmem:[%s5 + $0x98] sm:$0xf]
        %v1306 = vld [vmem:[%s5 + $0x9c] sm:$0xf]
        %v1307 = vld [vmem:[%s5 + $0xa0] sm:$0xf]
        %v1308 = vld [vmem:[%s5 + $0xa4] sm:$0xf]
        %v1309 = vld [vmem:[%s5 + $0xa8] sm:$0xf]
        %v1310 = vld [vmem:[%s5 + $0xac] sm:$0xf]
        %v1311 = vld [vmem:[%s5 + $0xb0] sm:$0xf]
        %v1312 = vld [vmem:[%s5 + $0xb4] sm:$0xf]
        %v1313 = vld [vmem:[%s5 + $0xb8] sm:$0xf]
        %v1314 = vld [vmem:[%s5 + $0xbc] sm:$0xf]
        %v1315 = vld [vmem:[%s5 + $0xc0] sm:$0xf]
        %v1316 = vld [vmem:[%s5 + $0xc4] sm:$0xf]
        %v1317 = vld [vmem:[%s5 + $0xc8] sm:$0xf]
        %v1318 = vld [vmem:[%s5 + $0xcc] sm:$0xf]
        %v1319 = vld [vmem:[%s5 + $0xd0] sm:$0xf]
        %v1320 = vld [vmem:[%s5 + $0xd4] sm:$0xf]
        %v1321 = vld [vmem:[%s5 + $0xd8] sm:$0xf]
        %v1322 = vld [vmem:[%s5 + $0xdc] sm:$0xf]
        %v1323 = vld [vmem:[%s5 + $0xe0] sm:$0xf]
        %v1324 = vld [vmem:[%s5 + $0xe4] sm:$0xf]
        %v1325 = vld [vmem:[%s5 + $0xe8] sm:$0xf]
        %v1326 = vld [vmem:[%s5 + $0xec] sm:$0xf]
        %v1327 = vld [vmem:[%s5 + $0xf0] sm:$0xf]
        %v1328 = vld [vmem:[%s5 + $0xf4] sm:$0xf]
        %v1329 = vld [vmem:[%s5 + $0xf8] sm:$0xf]
        %v1330 = vld [vmem:[%s5 + $0xfc] sm:$0xf]
        %v1395 = vunpack.c.l.b16 %v1267
        %v1396 = vunpack.c.l.b16 %v1268
        %v1397 = vunpack.c.l.b16 %v1269
        %v1398 = vunpack.c.l.b16 %v1270
        %v1399 = vunpack.c.l.b16 %v1271
        %v1400 = vunpack.c.l.b16 %v1272
        %v1401 = vunpack.c.l.b16 %v1273
        %v1402 = vunpack.c.l.b16 %v1274
        %v1403 = vunpack.c.l.b16 %v1275
        %v1404 = vunpack.c.l.b16 %v1276
        %v1405 = vunpack.c.l.b16 %v1277
        %v1406 = vunpack.c.l.b16 %v1278
        %v1407 = vunpack.c.l.b16 %v1279
        %v1408 = vunpack.c.l.b16 %v1280
        %v1409 = vunpack.c.l.b16 %v1281
        %v1410 = vunpack.c.l.b16 %v1282
        %v1411 = vunpack.c.l.b16 %v1283
        %v1412 = vunpack.c.l.b16 %v1284
        %v1413 = vunpack.c.l.b16 %v1285
        %v1414 = vunpack.c.l.b16 %v1286
        %v1415 = vunpack.c.l.b16 %v1287
        %v1416 = vunpack.c.l.b16 %v1288
        %v1417 = vunpack.c.l.b16 %v1289
        %v1418 = vunpack.c.l.b16 %v1290
        %v1419 = vunpack.c.l.b16 %v1291
        %v1420 = vunpack.c.l.b16 %v1292
        %v1421 = vunpack.c.l.b16 %v1293
        %v1422 = vunpack.c.l.b16 %v1294
        %v1423 = vunpack.c.l.b16 %v1295
        %v1424 = vunpack.c.l.b16 %v1296
        %v1425 = vunpack.c.l.b16 %v1297
        %v1426 = vunpack.c.l.b16 %v1298
        %v1427 = vunpack.c.l.b16 %v1299
        %v1428 = vunpack.c.l.b16 %v1300
        %v1429 = vunpack.c.l.b16 %v1301
        %v1430 = vunpack.c.l.b16 %v1302
        %v1431 = vunpack.c.l.b16 %v1303
        %v1432 = vunpack.c.l.b16 %v1304
        %v1433 = vunpack.c.l.b16 %v1305
        %v1434 = vunpack.c.l.b16 %v1306
        %v1435 = vunpack.c.l.b16 %v1307
        %v1436 = vunpack.c.l.b16 %v1308
        %v1437 = vunpack.c.l.b16 %v1309
        %v1438 = vunpack.c.l.b16 %v1310
        %v1439 = vunpack.c.l.b16 %v1311
        %v1440 = vunpack.c.l.b16 %v1312
        %v1441 = vunpack.c.l.b16 %v1313
        %v1442 = vunpack.c.l.b16 %v1314
        %v1443 = vunpack.c.l.b16 %v1315
        %v1444 = vunpack.c.l.b16 %v1316
        %v1445 = vunpack.c.l.b16 %v1317
        %v1446 = vunpack.c.l.b16 %v1318
        %v1447 = vunpack.c.l.b16 %v1319
        %v1448 = vunpack.c.l.b16 %v1320
        %v1449 = vunpack.c.l.b16 %v1321
        %v1450 = vunpack.c.l.b16 %v1322
        %v1451 = vunpack.c.l.b16 %v1323
        %v1452 = vunpack.c.l.b16 %v1324
        %v1453 = vunpack.c.l.b16 %v1325
        %v1454 = vunpack.c.l.b16 %v1326
        %v1455 = vunpack.c.l.b16 %v1327
        %v1456 = vunpack.c.l.b16 %v1328
        %v1457 = vunpack.c.l.b16 %v1329
        %v1458 = vunpack.c.l.b16 %v1330
        %v1459 = vpack.c.b16 %v1396, %v1395
        %v1460 = vpack.c.b16 %v1398, %v1397
        %v1461 = vpack.c.b16 %v1400, %v1399
        %v1462 = vpack.c.b16 %v1402, %v1401
        %v1463 = vpack.c.b16 %v1404, %v1403
        %v1464 = vpack.c.b16 %v1406, %v1405
        %v1465 = vpack.c.b16 %v1408, %v1407
        %v1466 = vpack.c.b16 %v1410, %v1409
        %v1467 = vpack.c.b16 %v1412, %v1411
        %v1468 = vpack.c.b16 %v1414, %v1413
        %v1469 = vpack.c.b16 %v1416, %v1415
        %v1470 = vpack.c.b16 %v1418, %v1417
        %v1471 = vpack.c.b16 %v1420, %v1419
        %v1472 = vpack.c.b16 %v1422, %v1421
        %v1473 = vpack.c.b16 %v1424, %v1423
        %v1474 = vpack.c.b16 %v1426, %v1425
        %v1475 = vpack.c.b16 %v1428, %v1427
        %v1476 = vpack.c.b16 %v1430, %v1429
        %v1477 = vpack.c.b16 %v1432, %v1431
        %v1478 = vpack.c.b16 %v1434, %v1433
        %v1479 = vpack.c.b16 %v1436, %v1435
        %v1480 = vpack.c.b16 %v1438, %v1437
        %v1481 = vpack.c.b16 %v1440, %v1439
        %v1482 = vpack.c.b16 %v1442, %v1441
        %v1483 = vpack.c.b16 %v1444, %v1443
        %v1484 = vpack.c.b16 %v1446, %v1445
        %v1485 = vpack.c.b16 %v1448, %v1447
        %v1486 = vpack.c.b16 %v1450, %v1449
        %v1487 = vpack.c.b16 %v1452, %v1451
        %v1488 = vpack.c.b16 %v1454, %v1453
        %v1489 = vpack.c.b16 %v1456, %v1455
        %v1490 = vpack.c.b16 %v1458, %v1457
        %1523 = vmatpush.bf16.msra.mxu0 %v1466
        %1524 = vmatpush.bf16.msra.mxu0 %v1465
        %1525 = vmatpush.bf16.msra.mxu0 %v1464
        %1526 = vmatpush.bf16.msra.mxu0 %v1463
        %1527 = vmatpush.bf16.msra.mxu0 %v1462
        %1528 = vmatpush.bf16.msra.mxu0 %v1461
        %1529 = vmatpush.bf16.msra.mxu0 %v1460
        %1530 = vmatpush.bf16.msra.mxu0 %v1459
        %1531 = vmatmul.bf16.gmra.mxu0 %v1259
        %v1532 = vpop.f32.mrf.mxu0
        %v1533 = vadd.f32 %v534, %v1532
        %v1534 = vpop.f32.mrf.mxu0
        %v1535 = vadd.f32 %v536, %v1534
        %1536 = vmatmul.bf16.gmra.mxu0 %v1263
        %v1537 = vpop.f32.mrf.mxu0
        %v1538 = vadd.f32 %v539, %v1537
        %v1539 = vpop.f32.mrf.mxu0
        %v1540 = vadd.f32 %v541, %v1539
        %1541 = vdwg.mxu0
        %1542 = vmatpush.bf16.msra.mxu0 %v1474
        %1543 = vmatpush.bf16.msra.mxu0 %v1473
        %1544 = vmatpush.bf16.msra.mxu0 %v1472
        %1545 = vmatpush.bf16.msra.mxu0 %v1471
        %1546 = vmatpush.bf16.msra.mxu0 %v1470
        %1547 = vmatpush.bf16.msra.mxu0 %v1469
        %1548 = vmatpush.bf16.msra.mxu0 %v1468
        %1549 = vmatpush.bf16.msra.mxu0 %v1467
        %1550 = vmatmul.bf16.gmra.mxu0 %v1260
        %v1551 = vpop.f32.mrf.mxu0
        %v1552 = vadd.f32 %v1533, %v1551
        %v1553 = vpop.f32.mrf.mxu0
        %v1554 = vadd.f32 %v1535, %v1553
        %1555 = vmatmul.bf16.gmra.mxu0 %v1264
        %v1556 = vpop.f32.mrf.mxu0
        %v1557 = vadd.f32 %v1538, %v1556
        %v1558 = vpop.f32.mrf.mxu0
        %v1559 = vadd.f32 %v1540, %v1558
        %1560 = vdwg.mxu0
        %1561 = vmatpush.bf16.msra.mxu0 %v1482
        %1562 = vmatpush.bf16.msra.mxu0 %v1481
        %1563 = vmatpush.bf16.msra.mxu0 %v1480
        %1564 = vmatpush.bf16.msra.mxu0 %v1479
        %1565 = vmatpush.bf16.msra.mxu0 %v1478
        %1566 = vmatpush.bf16.msra.mxu0 %v1477
        %1567 = vmatpush.bf16.msra.mxu0 %v1476
        %1568 = vmatpush.bf16.msra.mxu0 %v1475
        %1569 = vmatmul.bf16.gmra.mxu0 %v1261
        %v1570 = vpop.f32.mrf.mxu0
        %v1571 = vadd.f32 %v1552, %v1570
        %v1572 = vpop.f32.mrf.mxu0
        %v1573 = vadd.f32 %v1554, %v1572
        %1574 = vmatmul.bf16.gmra.mxu0 %v1265
        %v1575 = vpop.f32.mrf.mxu0
        %v1576 = vadd.f32 %v1557, %v1575
        %v1577 = vpop.f32.mrf.mxu0
        %v1578 = vadd.f32 %v1559, %v1577
        %1579 = vdwg.mxu0
        %1580 = vmatpush.bf16.msra.mxu0 %v1490
        %1581 = vmatpush.bf16.msra.mxu0 %v1489
        %1582 = vmatpush.bf16.msra.mxu0 %v1488
        %1583 = vmatpush.bf16.msra.mxu0 %v1487
        %1584 = vmatpush.bf16.msra.mxu0 %v1486
        %1585 = vmatpush.bf16.msra.mxu0 %v1485
        %1586 = vmatpush.bf16.msra.mxu0 %v1484
        %1587 = vmatpush.bf16.msra.mxu0 %v1483
        %1588 = vmatmul.bf16.gmra.mxu0 %v1262
        %v1589 = vpop.f32.mrf.mxu0
        %v1590 = vadd.f32 %v1571, %v1589
        %v1591 = vpop.f32.mrf.mxu0
        %v1592 = vadd.f32 %v1573, %v1591
        %1593 = vmatmul.bf16.gmra.mxu0 %v1266
        %v1594 = vpop.f32.mrf.mxu0
        %v1595 = vadd.f32 %v1576, %v1594
        %v1596 = vpop.f32.mrf.mxu0
        %v1597 = vadd.f32 %v1578, %v1596
        %1598 = vdwg.mxu0
        %v1599 = vld [vmem:[%s6] sm:$0x1]
        %v1601 = vperm.slane %v1599, 0
        %v1603 = vadd.f32 %v1590, %v1601
        %v1604 = vadd.f32 %v1592, %v1601
        %v1605 = vadd.f32 %v1595, %v1601
        %v1606 = vadd.f32 %v1597, %v1601
        %v1607 = vlaneseq
        %v1608 = vand.u32 %v1607, 127
        %vm1609 = vcmp.gt.f32.partialorder %v1603, 0.0
        %vm1610 = vcmp.gt.f32.partialorder %v1604, 0.0
        %vm1611 = vcmp.gt.f32.partialorder %v1605, 0.0
        %vm1612 = vcmp.gt.f32.partialorder %v1606, 0.0
        %v1613 = vmin.f32 %v1603, 0.0
        %v1614 = vmin.f32 %v1604, 0.0
        %v1615 = vmin.f32 %v1605, 0.0
        %v1616 = vmin.f32 %v1606, 0.0
        %v1617 = vmul.f32 %v1613, 1.442695
        %v1618 = vpow.pop %v1617
        %v1619 = vmul.f32 %v1614, 1.442695
        %v1620 = vpow.pop %v1619
        %v1621 = vmul.f32 %v1615, 1.442695
        %v1622 = vpow.pop %v1621
        %v1623 = vmul.f32 %v1616, 1.442695
        %v1624 = vpow.pop %v1623
        %v1625 = vsub.f32 %v1618, 1.0
        %v1626 = vsub.f32 %v1620, 1.0
        %v1627 = vsub.f32 %v1622, 1.0
        %v1628 = vsub.f32 %v1624, 1.0
        %v1629 = vsel %vm1609, %v1603, %v1625
        %v1630 = vsel %vm1610, %v1604, %v1626
        %v1631 = vsel %vm1611, %v1605, %v1627
        %v1632 = vsel %vm1612, %v1606, %v1628
        %vm1633 = vcmp.lt.s32.totalorder %v1608, 64
        %v1634 = vsel %vm1633, %v1629, %v1603
        %v1635 = vsel %vm1633, %v1630, %v1604
        %v1636 = vsel %vm1633, %v1631, %v1605
        %v1637 = vsel %vm1633, %v1632, %v1606
        %1638 = vst [vmem:[%s322] sm:$0xff] %v1634
        %1639 = vst [vmem:[%s322 + $0x8] sm:$0xff] %v1635
        %1640 = vst [vmem:[%s322 + $0x10] sm:$0xff] %v1636
        %1641 = vst [vmem:[%s322 + $0x18] sm:$0xff] %v1637
        %s1642 = sand.u32 %s183, 1
        %s1643 = scalar_lea.sflag [#allocation4], %s1642
        %s1644 = sand.u32 %s183, 1
        %s1645 = smul.addr %s1644, 32
        %s1646 = scalar_lea.vmem [#allocation8], %s1645
        // Predicated region
        $region61: #{cpu_player_forward.1} parent=47 // pred_check
          %p1647 = pneg %p193
        $region62: #{cpu_player_forward.1} parent=47 // pred_check_branch
          %1649 = sbr.rel (%p1647) target = $region64
        $region63: #{cpu_player_forward.1} parent=47 // pred_region
          %s1650 = smul.u32 4, %s23
          %1652 = vsyncadd %s1643, 0
          %s1653 = smul.addr %s1650, 8
          %s1654 = scalar_lea.hbm %s7, %s1653
          %s1655 = sshll.u32 %s1646, 4
          %s1656 = int_to_ptr.vmem [resolvable:$true] %s1655
          %s1657 = sshll.u32 %s1654, 4
          %s1658 = int_to_ptr.hbm [resolvable:$true] %s1657
          %1663 = dma.vmem_to_hbm [thread:$0]  %s1656, 512, %s1658, %s1643, 128, 128, 8
        $region64: #{cpu_player_forward.1} parent=47 // pred_fallthru
          _
      $region48: #{cpu_player_forward.1} parent=5 // pred_fallthru
        _
      %p1664 = scmp.le.s32.totalorder 2, %s18
      // Predicated region
      $region65: #{cpu_player_forward.1} parent=5 // pred_check
        %p1665 = pneg %p1664
      $region66: #{cpu_player_forward.1} parent=5 // pred_check_branch
        %1667 = sbr.rel (%p1665) target = $region68
      $region67: #{cpu_player_forward.1} parent=5 // pred_region
        %s1668 = ssub.s32 %s18, 2
        // Predicated region
        $region69: #{cpu_player_forward.1} parent=67 // pred_check
          %p1669 = pneg %p199
        $region70: #{cpu_player_forward.1} parent=67 // pred_check_branch
          %1671 = sbr.rel (%p1669) target = $region72
        $region71: #{cpu_player_forward.1} parent=67 // pred_region
          %s1672 = sand.u32 %s184, 1
          %s1673 = scalar_lea.sflag [#allocation4], %s1672
          %s1674 = sand.u32 %s184, 1
          %s1675 = smul.addr %s1674, 32
          %s1676 = scalar_lea.vmem [#allocation8], %s1675
          %1678 = dma.done %s1673, 512
        $region72: #{cpu_player_forward.1} parent=67 // pred_fallthru
          _
      $region68: #{cpu_player_forward.1} parent=5 // pred_fallthru
        _
    $region6: #{cpu_player_forward.1} parent=1 // loop_footer
      %s22 = sadd.s32 1, %s18
    $region7: #{cpu_player_forward.1} parent=1 // loop_footer_branch
      %17 = sbr.rel target = $region3
    $region8: #{cpu_player_forward.1} parent=1 // loop_exit
      _
    %1679 = vsyncpa [#allocation3], 1
    %s1680 = scalar_lea.sflag [#allocation3], 1
    %1681 = vsyncpa %s1680, 1
    %1682 = vsyncpa [#allocation6], 1
    %1683 = vsyncpa [#allocation4], 1
    %s1684 = scalar_lea.sflag [#allocation4], 1
    %1685 = vsyncpa %s1684, 1

</llo_original>
